<compile_context>
chip_gen: v6e
topology: v6e:2x2x1
jax: 0.10.0
libtpu: 0.0.40
codegen_flags: <defaults>
</compile_context>

<pallas_src>
import functools

import jax
import jax.numpy as jnp
import numpy as np
from jax.experimental import pallas as pl
from jax.experimental.pallas import tpu as pltpu


def _round_up(x, m):
    return ((x + m - 1) // m) * m


def _vmem_limit_bytes():
    """Generation-aware scoped-VMEM limit: leave 16 MiB headroom under physical
    capacity (64 MiB on v7x, 128 MiB on v5e/v6e), cap at 96 MiB."""
    try:
        cap = int(pltpu.get_tpu_info().vmem_capacity_bytes)
    except Exception:
        cap = 64 * 1024 * 1024          # conservative (v7x-safe) fallback
    return int(max(32 * 1024 * 1024,
                   min(cap - 16 * 1024 * 1024, 96 * 1024 * 1024)))


_VMEM_LIMIT = _vmem_limit_bytes()


# ----------------------------------------------------------------------------
# Fused conv(GEMM) + BatchNorm + (residual) + ReLU Pallas kernels
# ----------------------------------------------------------------------------

def _pick_tiles(Mp, Kp, Np):
    """Lane-dense N tile; largest 128-multiple K tile that divides Kp and keeps
    the double-buffered LHS slab stream within ~8 MiB per buffer."""
    tn = 256 if (Np % 256 == 0 and Np > 256 and Mp <= 8192) else 128
    lhs_budget = 8 * 1024 * 1024                       # bytes / LHS buffer (bf16)
    cap = max(128, min(1024, (lhs_budget // (2 * Mp)) // 128 * 128))
    tk, t = 128, 128
    while t <= min(cap, Kp):
        if Kp % t == 0:
            tk = t
        t += 128
    return tn, tk


def _batch_stats(acc, m_real):
    """Per-column (per-channel) mean/var over the first m_real rows in f32.
    Single pass: sum + sum-of-squares, var = E[x^2] - mean^2 (clamped >= 0)."""
    mp = acc.shape[0]
    inv = np.float32(1.0 / m_real)
    if m_real == mp:
        s = jnp.sum(acc, axis=0, keepdims=True)
        ss = jnp.sum(acc * acc, axis=0, keepdims=True)
    else:
        # Padded (zero) rows must not contaminate the batch statistics.
        row = jax.lax.broadcasted_iota(jnp.int32, (mp, 1), 0)
        am = jnp.where(row < m_real, acc, 0.0)
        s = jnp.sum(am, axis=0, keepdims=True)
        ss = jnp.sum(am * acc, axis=0, keepdims=True)
    mean = s * inv
    var = jnp.maximum(ss * inv - mean * mean, 0.0)
    return mean, var


def _bn_epilogue(acc, g, bt, res, m_real, relu, relu_tiles, out_dtype):
    """Train-mode BN -> affine -> [+residual] -> [ReLU] on an f32 accumulator."""
    mean, var = _batch_stats(acc, m_real)
    scale = jax.lax.rsqrt(var + 1e-5) * g              # fold rsqrt into gamma row
    y = (acc - mean) * scale + bt
    if res is not None:
        y = y + res.astype(jnp.float32)
    if relu_tiles is not None:
        # Fused c1+downsample path: ReLU only on the first `relu_tiles` N tiles.
        y = jnp.where(pl.program_id(0) < relu_tiles, jnp.maximum(y, 0.0), y)
    elif relu:
        y = jnp.maximum(y, 0.0)
    return y.astype(out_dtype)


def _gemm_bn_kernel_1k(a_ref, b_ref, g_ref, bt_ref, o_ref, *,
                       m_real, relu, relu_tiles):
    acc = jnp.dot(a_ref[...], b_ref[...], preferred_element_type=jnp.float32)
    o_ref[...] = _bn_epilogue(acc, g_ref[...], bt_ref[...], None,
                              m_real, relu, relu_tiles, o_ref.dtype)


def _gemm_bn_res_kernel_1k(a_ref, b_ref, g_ref, bt_ref, r_ref, o_ref, *, m_real):
    acc = jnp.dot(a_ref[...], b_ref[...], preferred_element_type=jnp.float32)
    o_ref[...] = _bn_epilogue(acc, g_ref[...], bt_ref[...], r_ref[...],
                              m_real, True, None, o_ref.dtype)


def _gemm_bn_kernel_nk(a_ref, b_ref, g_ref, bt_ref, o_ref, acc_ref, *,
                       m_real, relu, relu_tiles):
    k = pl.program_id(1)

    @pl.when(k == 0)
    def _():
        acc_ref[...] = jnp.zeros_like(acc_ref)

    acc_ref[...] += jnp.dot(a_ref[...], b_ref[...],
                            preferred_element_type=jnp.float32)

    @pl.when(k == pl.num_programs(1) - 1)
    def _():
        o_ref[...] = _bn_epilogue(acc_ref[...], g_ref[...], bt_ref[...], None,
                                  m_real, relu, relu_tiles, o_ref.dtype)


def _gemm_bn_res_kernel_nk(a_ref, b_ref, g_ref, bt_ref, r_ref, o_ref, acc_ref, *,
                           m_real):
    k = pl.program_id(1)

    @pl.when(k == 0)
    def _():
        acc_ref[...] = jnp.zeros_like(acc_ref)

    acc_ref[...] += jnp.dot(a_ref[...], b_ref[...],
                            preferred_element_type=jnp.float32)

    @pl.when(k == pl.num_programs(1) - 1)
    def _():
        o_ref[...] = _bn_epilogue(acc_ref[...], g_ref[...], bt_ref[...],
                                  r_ref[...], m_real, True, None, o_ref.dtype)


def _fused_gemm_bn(A, B, gamma, beta, residual, m_real, relu, relu_cols):
    """One pallas_call = conv + BN (+res) + ReLU; output written to HBM once."""
    Mp, Kp = A.shape
    _, Np = B.shape
    tn, tk = _pick_tiles(Mp, Kp, Np)
    nn, nk = Np // tn, Kp // tk
    relu_tiles = None
    if relu_cols is not None:
        assert relu_cols % tn == 0
        relu_tiles = relu_cols // tn

    in_specs = [
        pl.BlockSpec((Mp, tk), lambda j, k: (0, k)),   # LHS streamed along K
        pl.BlockSpec((tk, tn), lambda j, k: (k, j)),   # weight slab
        pl.BlockSpec((1, tn), lambda j, k: (0, j)),    # gamma
        pl.BlockSpec((1, tn), lambda j, k: (0, j)),    # beta
    ]
    args = [A, B, gamma, beta]
    if residual is not None:
        in_specs.append(pl.BlockSpec((Mp, tn), lambda j, k: (0, j)))
        args.append(residual)

    if nk == 1:
        scratch_shapes = []
        if residual is not None:
            kernel = functools.partial(_gemm_bn_res_kernel_1k, m_real=m_real)
        else:
            kernel = functools.partial(_gemm_bn_kernel_1k, m_real=m_real,
                                       relu=relu, relu_tiles=relu_tiles)
    else:
        scratch_shapes = [pltpu.VMEM((Mp, tn), jnp.float32)]
        if residual is not None:
            kernel = functools.partial(_gemm_bn_res_kernel_nk, m_real=m_real)
        else:
            kernel = functools.partial(_gemm_bn_kernel_nk, m_real=m_real,
                                       relu=relu, relu_tiles=relu_tiles)

    return pl.pallas_call(
        kernel,
        out_shape=jax.ShapeDtypeStruct((Mp, Np), jnp.bfloat16),
        grid_spec=pltpu.PrefetchScalarGridSpec(
            num_scalar_prefetch=0,
            grid=(nn, nk),
            in_specs=in_specs,
            out_specs=pl.BlockSpec((Mp, tn), lambda j, k: (0, j)),
            scratch_shapes=scratch_shapes),
        compiler_params=pltpu.CompilerParams(
            dimension_semantics=("parallel", "arbitrary"),
            vmem_limit_bytes=_VMEM_LIMIT),
    )(*args)


# ----------------------------------------------------------------------------
# Conv wrapper (im2col glue in bf16 + fused Pallas GEMM/BN kernel)
# ----------------------------------------------------------------------------

def _im2col(x, k, stride, pad):
    """Unfold kxk patches (tap-major, channels innermost) into a GEMM LHS."""
    N, H, W, C = x.shape
    OH = (H + 2 * pad - k) // stride + 1
    OW = (W + 2 * pad - k) // stride + 1
    if pad:
        x = jnp.pad(x, ((0, 0), (pad, pad), (pad, pad), (0, 0)))
    if k == 1 and stride == 1:
        patches = x
    else:
        cols = [x[:, di:di + (OH - 1) * stride + 1:stride,
                  dj:dj + (OW - 1) * stride + 1:stride, :]
                for di in range(k) for dj in range(k)]
        patches = cols[0] if len(cols) == 1 else jnp.concatenate(cols, axis=-1)
    return patches.reshape(N * OH * OW, k * k * C), (N, OH, OW)


@functools.partial(jax.jit, static_argnames=("k", "stride", "pad", "relu",
                                             "cout", "relu_cols", "keep_pad"))
def conv_bn(x, w_mat, gamma, beta, residual=None, *, k, stride, pad, relu,
            cout, relu_cols=None, keep_pad=False):
    """conv(bias=False) -> train-mode BN -> [+residual] -> [ReLU]."""
    A, (N, OH, OW) = _im2col(x, k, stride, pad)           # bf16 LHS
    M, K = A.shape
    Kp, Np = w_mat.shape                                   # weights pre-padded
    Mp = _round_up(M, 8)
    assert Mp <= 16384, "feature map too large for the single-M-tile BN path"
    assert K <= Kp
    if (Mp, Kp) != (M, K):
        A = jnp.pad(A, ((0, Mp - M), (0, Kp - K)))
    r = None
    if residual is not None:
        r = residual.reshape(M, -1)
        if r.shape != (Mp, Np):
            r = jnp.pad(r, ((0, Mp - M), (0, Np - r.shape[1])))
    y = _fused_gemm_bn(A, w_mat, gamma, beta, r, M, relu, relu_cols)
    c = Np if keep_pad else cout
    return y[:M, :c].reshape(N, OH, OW, c)


# ----------------------------------------------------------------------------
# 3x3 / stride-2 / pad-1 max pool, written directly at output resolution
# ----------------------------------------------------------------------------

def _maxpool3x3s2_kernel(ee_ref, eo_ref, oe_ref, oo_ref, o_ref, *, OH, OW):
    ee = ee_ref[...]      # xp[2i,   2j  ]
    eo = eo_ref[...]      # xp[2i,   2j+1]
    oe = oe_ref[...]      # xp[2i+1, 2j  ]
    oo = oo_ref[...]      # xp[2i+1, 2j+1]
    m = oo[:, :OH, :OW, :]                                # (2i+1, 2j+1)
    m = jnp.maximum(m, eo[:, :OH, :OW, :])                # (2i,   2j+1)
    m = jnp.maximum(m, eo[:, 1:OH + 1, :OW, :])           # (2i+2, 2j+1)
    m = jnp.maximum(m, oe[:, :OH, :OW, :])                # (2i+1, 2j  )
    m = jnp.maximum(m, oe[:, :OH, 1:OW + 1, :])           # (2i+1, 2j+2)
    m = jnp.maximum(m, ee[:, :OH, :OW, :])                # (2i,   2j  )
    m = jnp.maximum(m, ee[:, :OH, 1:OW + 1, :])           # (2i,   2j+2)
    m = jnp.maximum(m, ee[:, 1:OH + 1, :OW, :])           # (2i+2, 2j  )
    m = jnp.maximum(m, ee[:, 1:OH + 1, 1:OW + 1, :])      # (2i+2, 2j+2)
    o_ref[...] = m


@jax.jit
def maxpool_3x3_s2_p1(x):
    # Fed with lane-padded C=128 input -> lane-dense (unmasked) loads/stores.
    N, H, W, C = x.shape
    assert H % 2 == 0 and W % 2 == 0
    OH, OW = H // 2, W // 2
    neg = jnp.finfo(x.dtype).min
    xp = jnp.pad(x, ((0, 0), (1, 1), (1, 1), (0, 0)), constant_values=neg)
    # Even/odd split (one XLA pass) turns the stride-2 window max into
    # unit-stride slices in the kernel and a direct (N, OH, OW, C) store.
    ee = xp[:, 0::2, 0::2, :]
    eo = xp[:, 0::2, 1::2, :]
    oe = xp[:, 1::2, 0::2, :]
    oo = xp[:, 1::2, 1::2, :]
    spec_in = pl.BlockSpec((1, OH + 1, OW + 1, C), lambda n: (n, 0, 0, 0))
    return pl.pallas_call(
        functools.partial(_maxpool3x3s2_kernel, OH=OH, OW=OW),
        out_shape=jax.ShapeDtypeStruct((N, OH, OW, C), x.dtype),
        grid_spec=pltpu.PrefetchScalarGridSpec(
            num_scalar_prefetch=0,
            grid=(N,),
            in_specs=[spec_in] * 4,
            out_specs=pl.BlockSpec((1, OH, OW, C), lambda n: (n, 0, 0, 0))),
        compiler_params=pltpu.CompilerParams(
            dimension_semantics=("parallel",),
            vmem_limit_bytes=_VMEM_LIMIT),
    )(ee, eo, oe, oo)


# ----------------------------------------------------------------------------
# Bottleneck blocks, parameter init (deterministic synthetic) and forward pass
# ----------------------------------------------------------------------------

def _bottleneck(x, p):
    width, cout = p["width"], p["cout"]
    if "c1down" in p:
        # Fused 1x1 c1 + 1x1 downsample (stride-1 block with downsample): weights
        # concatenated along N at init; BN stats are per-column so the result is
        # bit-identical to two separate convs.  ReLU applies to the c1 columns
        # only (first `width` columns -> first N tiles).
        y = conv_bn(x, p["c1down"]["w"], p["c1down"]["g"], p["c1down"]["b"],
                    k=1, stride=1, pad=0, relu=False, cout=width + cout,
                    relu_cols=width)
        out = y[..., :width]
        identity = y[..., width:]
    else:
        out = conv_bn(x, p["c1"]["w"], p["c1"]["g"], p["c1"]["b"],
                      k=1, stride=1, pad=0, relu=True, cout=width)
        identity = x
        if "down" in p:
            identity = conv_bn(x, p["down"]["w"], p["down"]["g"],
                               p["down"]["b"], k=1, stride=p["stride"], pad=0,
                               relu=False, cout=cout)
    out = conv_bn(out, p["c2"]["w"], p["c2"]["g"], p["c2"]["b"],
                  k=3, stride=p["stride"], pad=1, relu=True, cout=width)
    out = conv_bn(out, p["c3"]["w"], p["c3"]["g"], p["c3"]["b"], identity,
                  k=1, stride=1, pad=0, relu=True, cout=cout)
    return out


def init_wide_resnet50_2(key):
    kit = iter(jax.random.split(key, 256))

    def conv_param(cin, cout, k):
        fan_in = cin * k * k
        w = (jax.random.normal(next(kit), (k, k, cin, cout), jnp.float32)
             * np.float32(1.0 / np.sqrt(fan_in)))
        K = k * k * cin
        Kp, Np = _round_up(K, 128), _round_up(cout, 128)
        # GEMM layout, padded + cast to bf16 ONCE here -> no per-conv pad copies.
        w_mat = jnp.pad(w.reshape(K, cout),
                        ((0, Kp - K), (0, Np - cout))).astype(jnp.bfloat16)
        # NOTE: padded gamma columns are ZERO, so padded output channels are
        # exactly 0 after the BN affine -- the lane-padded conv1 -> maxpool ->
        # layer1 path relies on this.
        gamma = jnp.pad(jnp.ones((1, cout), jnp.float32),
                        ((0, 0), (0, Np - cout)))
        beta = jnp.zeros((1, Np), jnp.float32)
        return {"w": w_mat, "g": gamma, "b": beta}

    params = {"conv1": conv_param(3, 64, 7)}

    def make_layer(inplanes, planes, nblocks, stride, width):
        blocks = []
        for b in range(nblocks):
            s = stride if b == 0 else 1
            blk = {"stride": s, "width": width, "cout": planes * 4}
            c1 = conv_param(inplanes, width, 1)
            blk["c2"] = conv_param(width, width, 3)
            blk["c3"] = conv_param(width, planes * 4, 1)
            if s != 1 or inplanes != planes * 4:
                down = conv_param(inplanes, planes * 4, 1)
                if s == 1:
                    # stride-1 block with downsample (layer1 block0): fuse
                    # c1 + downsample along the GEMM N axis at init time.
                    blk["c1down"] = {
                        "w": jnp.concatenate([c1["w"], down["w"]], axis=1),
                        "g": jnp.concatenate([c1["g"], down["g"]], axis=1),
                        "b": jnp.concatenate([c1["b"], down["b"]], axis=1)}
                else:
                    blk["c1"] = c1
                    blk["down"] = down
            else:
                blk["c1"] = c1
            blocks.append(blk)
            inplanes = planes * 4
        return blocks, inplanes

    inplanes = 64
    cfg = [(64, 3, 1), (128, 4, 2), (256, 6, 2), (512, 3, 2)]
    for li, (planes, nblocks, stride) in enumerate(cfg, start=1):
        width = planes * 2  # wide_resnet50_2: width_per_group = 128
        params[f"layer{li}"], inplanes = make_layer(inplanes, planes, nblocks,
                                                    stride, width)
    return params


def backbone_forward(params, x_nchw):
    x = jnp.transpose(x_nchw, (0, 2, 3, 1)).astype(jnp.bfloat16)   # NHWC, bf16
    # layer0: conv7x7/s2 + BN + ReLU (fused) + maxpool3x3/s2.  conv1's output is
    # kept lane-padded to 128 channels (padded channels are exactly 0), so the
    # maxpool and layer1's first GEMMs stay lane-dense; only the feature that is
    # returned to the caller is sliced back to 64 channels.
    x = conv_bn(x, params["conv1"]["w"], params["conv1"]["g"],
                params["conv1"]["b"], k=7, stride=2, pad=3, relu=True, cout=64,
                keep_pad=True)
    x0p = maxpool_3x3_s2_p1(x)                       # (N, OH, OW, 128)
    feats = [x0p[..., :64]]
    h = x0p
    for li in range(1, 5):
        for blk in params[f"layer{li}"]:
            h = _bottleneck(h, blk)
        feats.append(h)
    # back to PyTorch NCHW / f32 convention
    return [jnp.transpose(f, (0, 3, 1, 2)).astype(jnp.float32) for f in feats]


# ----------------------------------------------------------------------------

if __name__ == "__main__":
    key = jax.random.PRNGKey(0)
    pkey, xkey = jax.random.split(key)
    params = init_wide_resnet50_2(pkey)

    x = jax.random.normal(xkey, (2, 3, 32, 32), jnp.float32)   # small NCHW input
    outs = backbone_forward(params, x)
    outs = jax.block_until_ready(outs)

    expected = [(2, 64, 8, 8), (2, 256, 8, 8), (2, 512, 4, 4),
                (2, 1024, 2, 2), (2, 2048, 1, 1)]
    got = [tuple(o.shape) for o in outs]
    assert got == expected, f"shape mismatch: {got} vs {expected}"
    assert all(bool(jnp.all(jnp.isfinite(o))) for o in outs)
    print("KERNEL_OK")
</pallas_src>

<mosaic_0001>
module attributes {stable_mosaic.version = 11 : i64} {
  func.func @_gemm_bn_kernel_1k(%arg0: i32, %arg1: i32, %arg2: memref<512x256xbf16, #tpu.memory_space<vmem>>, %arg3: memref<256x128xbf16, #tpu.memory_space<vmem>>, %arg4: memref<1x128xf32, #tpu.memory_space<vmem>>, %arg5: memref<1x128xf32, #tpu.memory_space<vmem>>, %arg6: memref<512x128xbf16, #tpu.memory_space<vmem>>) attributes {dimension_semantics = [#tpu.dimension_semantics<parallel>, #tpu.dimension_semantics<arbitrary>], iteration_bounds = array<i64: 1, 1>, scalar_prefetch = 0 : i64, scratch_operands = 0 : i64, tpu.core_type = #tpu.core_type<tc>, window_params = [{transform_indices = @transform_0, window_bounds = array<i64: 512, 256>}, {transform_indices = @transform_1, window_bounds = array<i64: 256, 128>}, {transform_indices = @transform_2, window_bounds = array<i64: 1, 128>}, {transform_indices = @transform_3, window_bounds = array<i64: 1, 128>}, {transform_indices = @transform_4, window_bounds = array<i64: 512, 128>}]} {
    %c0 = arith.constant 0 : index
    %c0_0 = arith.constant 0 : index
    %0 = vector.load %arg2[%c0, %c0_0] : memref<512x256xbf16, #tpu.memory_space<vmem>>, vector<512x256xbf16>
    %c0_1 = arith.constant 0 : index
    %c0_2 = arith.constant 0 : index
    %1 = vector.load %arg3[%c0_1, %c0_2] : memref<256x128xbf16, #tpu.memory_space<vmem>>, vector<256x128xbf16>
    %cst = arith.constant dense<0.000000e+00> : vector<512x128xf32>
    %2 = tpu.matmul %0, %1, %cst {dimension_numbers = #tpu.dot_dimension_numbers<[1], [0], [0], [1], [0, 0, 1, 1], [], []>} : vector<512x256xbf16>, vector<256x128xbf16>, vector<512x128xf32> -> vector<512x128xf32>
    %c0_3 = arith.constant 0 : index
    %c0_4 = arith.constant 0 : index
    %3 = vector.load %arg4[%c0_3, %c0_4] : memref<1x128xf32, #tpu.memory_space<vmem>>, vector<1x128xf32>
    %c0_5 = arith.constant 0 : index
    %c0_6 = arith.constant 0 : index
    %4 = vector.load %arg5[%c0_5, %c0_6] : memref<1x128xf32, #tpu.memory_space<vmem>>, vector<1x128xf32>
    %cst_7 = arith.constant dense<0.000000e+00> : vector<128xf32>
    %5 = vector.multi_reduction <add>, %2, %cst_7 [0] : vector<512x128xf32> to vector<128xf32>
    %6 = vector.shape_cast %5 : vector<128xf32> to vector<1x128xf32>
    %7 = arith.mulf %2, %2 : vector<512x128xf32>
    %cst_8 = arith.constant dense<0.000000e+00> : vector<128xf32>
    %8 = vector.multi_reduction <add>, %7, %cst_8 [0] : vector<512x128xf32> to vector<128xf32>
    %9 = vector.shape_cast %8 : vector<128xf32> to vector<1x128xf32>
    %cst_9 = arith.constant 0.001953125 : f32
    %10 = vector.broadcast %cst_9 : f32 to vector<1x128xf32>
    %11 = arith.mulf %6, %10 : vector<1x128xf32>
    %cst_10 = arith.constant 0.001953125 : f32
    %12 = vector.broadcast %cst_10 : f32 to vector<1x128xf32>
    %13 = arith.mulf %9, %12 : vector<1x128xf32>
    %14 = arith.mulf %11, %11 : vector<1x128xf32>
    %15 = arith.subf %13, %14 : vector<1x128xf32>
    %cst_11 = arith.constant 0.000000e+00 : f32
    %16 = vector.broadcast %cst_11 : f32 to vector<1x128xf32>
    %17 = arith.maximumf %15, %16 : vector<1x128xf32>
    %cst_12 = arith.constant 9.99999974E-6 : f32
    %18 = vector.broadcast %cst_12 : f32 to vector<1x128xf32>
    %19 = arith.addf %17, %18 : vector<1x128xf32>
    %20 = math.rsqrt %19 : vector<1x128xf32>
    %21 = arith.mulf %20, %3 : vector<1x128xf32>
    %22 = vector.broadcast %11 : vector<1x128xf32> to vector<512x128xf32>
    %23 = arith.subf %2, %22 : vector<512x128xf32>
    %24 = vector.broadcast %21 : vector<1x128xf32> to vector<512x128xf32>
    %25 = arith.mulf %23, %24 : vector<512x128xf32>
    %26 = vector.broadcast %4 : vector<1x128xf32> to vector<512x128xf32>
    %27 = arith.addf %25, %26 : vector<512x128xf32>
    %cst_13 = arith.constant 0.000000e+00 : f32
    %28 = vector.broadcast %cst_13 : f32 to vector<512x128xf32>
    %29 = arith.maximumf %27, %28 : vector<512x128xf32>
    %30 = arith.truncf %29 : vector<512x128xf32> to vector<512x128xbf16>
    %c0_14 = arith.constant 0 : index
    %c0_15 = arith.constant 0 : index
    %31 = vector.load %arg6[%c0_14, %c0_15] : memref<512x128xbf16, #tpu.memory_space<vmem>>, vector<512x128xbf16>
    tpu.vector_store %arg6[%c0_14, %c0_15], %30 {strides = array<i32>} : memref<512x128xbf16, #tpu.memory_space<vmem>>, vector<512x128xbf16>,
    return
  }
  func.func @transform_0(%arg0: i32, %arg1: i32) -> (i32, i32) {
    %c0_i32 = arith.constant 0 : i32
    %c0_i32_0 = arith.constant 0 : i32
    return %c0_i32, %arg1 : i32, i32
  }
  func.func @transform_1(%arg0: i32, %arg1: i32) -> (i32, i32) {
    %c0_i32 = arith.constant 0 : i32
    return %arg1, %arg0 : i32, i32
  }
  func.func @transform_2(%arg0: i32, %arg1: i32) -> (i32, i32) {
    %c0_i32 = arith.constant 0 : i32
    %c0_i32_0 = arith.constant 0 : i32
    return %c0_i32, %arg0 : i32, i32
  }
  func.func @transform_3(%arg0: i32, %arg1: i32) -> (i32, i32) {
    %c0_i32 = arith.constant 0 : i32
    %c0_i32_0 = arith.constant 0 : i32
    return %c0_i32, %arg0 : i32, i32
  }
  func.func @transform_4(%arg0: i32, %arg1: i32) -> (i32, i32) {
    %c0_i32 = arith.constant 0 : i32
    %c0_i32_0 = arith.constant 0 : i32
    return %c0_i32, %arg0 : i32, i32
  }
}

</mosaic_0001>

<llo_original>
// kernel: conv_bn.1
$region0: #{conv_bn.1}
  #allocation0 [shape = 'u32[]', space=smem, size = 0x4, offset = 0x4, fixed_abs, tag = 'smem constant byte address 0x4 - core index']
  #allocation1 [shape = 'u32[144,128]{1,0:T(1,128)}', space=vmem, size = 0x12000, scoped, tag = 'internal scratch']
  %s0 = inlined_call_operand.vmem [shape: bf16[512,256], index: 0, kind: input, shape index: {}]
  %s1 = inlined_call_operand.vmem [shape: bf16[256,128], index: 1, kind: input, shape index: {}]
  %s2 = inlined_call_operand.vmem [shape: f32[1,128], index: 2, kind: input, shape index: {}]
  %s3 = inlined_call_operand.vmem [shape: f32[1,128], index: 3, kind: input, shape index: {}]
  %s4 = inlined_call_operand.hbm [shape: bf16[512,128], index: 4, kind: output, shape index: {}]
  %s5 = sld [smem:[#allocation0]]
  $region26: #{conv_bn.1} parent=0
    _
  %s7 = ssub.s32 1, %s5
  %s8 = scalar_select 0, %s7, %s5
  $region1: #{conv_bn.1} parent=0
    #allocation2 [shape = 'u8[131072]{0}', space=vmem, size = 0x20000, scoped, tag = 'output window, operand 0, single buffered']
    #allocation3 [shape = 's32[1]{0}', space=sflag, size = 0x4, scoped, tag = 'scoped memory for conv_bn.1']
    %9 = vsyncpa [#allocation3], 0
    // Predicated region
    $region2: #{conv_bn.1} parent=1 // pred_check
      _
    $region3: #{conv_bn.1} parent=1 // pred_check_branch
      %11 = sbr.rel (0) target = $region5
    $region4: #{conv_bn.1} parent=1 // pred_region
      _
    $region5: #{conv_bn.1} parent=1 // pred_fallthru
      _
    // Predicated region
    $region6: #{conv_bn.1} parent=1 // pred_check
      _
    $region7: #{conv_bn.1} parent=1 // pred_check_branch
      %13 = sbr.rel (0) target = $region9
    $region8: #{conv_bn.1} parent=1 // pred_region
      _
    $region9: #{conv_bn.1} parent=1 // pred_fallthru
      _
    // Predicated region
    $region10: #{conv_bn.1} parent=1 // pred_check
      _
    $region11: #{conv_bn.1} parent=1 // pred_check_branch
      %15 = sbr.rel (0) target = $region13
    $region12: #{conv_bn.1} parent=1 // pred_region
      _
    $region13: #{conv_bn.1} parent=1 // pred_fallthru
      _
    // Predicated region
    $region14: #{conv_bn.1} parent=1 // pred_check
      _
    $region15: #{conv_bn.1} parent=1 // pred_check_branch
      %17 = sbr.rel (0) target = $region17
    $region16: #{conv_bn.1} parent=1 // pred_region
      _
    $region17: #{conv_bn.1} parent=1 // pred_fallthru
      _
    %v19 = vld [vmem:[%s0] sm:$0xff]
    %v20 = vld [vmem:[%s0 + $0x8] sm:$0xff]
    %v21 = vld [vmem:[%s0 + $0x10] sm:$0xff]
    %v22 = vld [vmem:[%s0 + $0x18] sm:$0xff]
    %v23 = vld [vmem:[%s0 + $0x20] sm:$0xff]
    %v24 = vld [vmem:[%s0 + $0x28] sm:$0xff]
    %v25 = vld [vmem:[%s0 + $0x30] sm:$0xff]
    %v26 = vld [vmem:[%s0 + $0x38] sm:$0xff]
    %v27 = vld [vmem:[%s0 + $0x40] sm:$0xff]
    %v28 = vld [vmem:[%s0 + $0x48] sm:$0xff]
    %v29 = vld [vmem:[%s0 + $0x50] sm:$0xff]
    %v30 = vld [vmem:[%s0 + $0x58] sm:$0xff]
    %v31 = vld [vmem:[%s0 + $0x60] sm:$0xff]
    %v32 = vld [vmem:[%s0 + $0x68] sm:$0xff]
    %v33 = vld [vmem:[%s0 + $0x70] sm:$0xff]
    %v34 = vld [vmem:[%s0 + $0x78] sm:$0xff]
    %v35 = vld [vmem:[%s0 + $0x80] sm:$0xff]
    %v36 = vld [vmem:[%s0 + $0x88] sm:$0xff]
    %v37 = vld [vmem:[%s0 + $0x90] sm:$0xff]
    %v38 = vld [vmem:[%s0 + $0x98] sm:$0xff]
    %v39 = vld [vmem:[%s0 + $0xa0] sm:$0xff]
    %v40 = vld [vmem:[%s0 + $0xa8] sm:$0xff]
    %v41 = vld [vmem:[%s0 + $0xb0] sm:$0xff]
    %v42 = vld [vmem:[%s0 + $0xb8] sm:$0xff]
    %v43 = vld [vmem:[%s0 + $0xc0] sm:$0xff]
    %v44 = vld [vmem:[%s0 + $0xc8] sm:$0xff]
    %v45 = vld [vmem:[%s0 + $0xd0] sm:$0xff]
    %v46 = vld [vmem:[%s0 + $0xd8] sm:$0xff]
    %v47 = vld [vmem:[%s0 + $0xe0] sm:$0xff]
    %v48 = vld [vmem:[%s0 + $0xe8] sm:$0xff]
    %v49 = vld [vmem:[%s0 + $0xf0] sm:$0xff]
    %v50 = vld [vmem:[%s0 + $0xf8] sm:$0xff]
    %v51 = vld [vmem:[%s0 + $0x100] sm:$0xff]
    %v52 = vld [vmem:[%s0 + $0x108] sm:$0xff]
    %v53 = vld [vmem:[%s0 + $0x110] sm:$0xff]
    %v54 = vld [vmem:[%s0 + $0x118] sm:$0xff]
    %v55 = vld [vmem:[%s0 + $0x120] sm:$0xff]
    %v56 = vld [vmem:[%s0 + $0x128] sm:$0xff]
    %v57 = vld [vmem:[%s0 + $0x130] sm:$0xff]
    %v58 = vld [vmem:[%s0 + $0x138] sm:$0xff]
    %v59 = vld [vmem:[%s0 + $0x140] sm:$0xff]
    %v60 = vld [vmem:[%s0 + $0x148] sm:$0xff]
    %v61 = vld [vmem:[%s0 + $0x150] sm:$0xff]
    %v62 = vld [vmem:[%s0 + $0x158] sm:$0xff]
    %v63 = vld [vmem:[%s0 + $0x160] sm:$0xff]
    %v64 = vld [vmem:[%s0 + $0x168] sm:$0xff]
    %v65 = vld [vmem:[%s0 + $0x170] sm:$0xff]
    %v66 = vld [vmem:[%s0 + $0x178] sm:$0xff]
    %v67 = vld [vmem:[%s0 + $0x180] sm:$0xff]
    %v68 = vld [vmem:[%s0 + $0x188] sm:$0xff]
    %v69 = vld [vmem:[%s0 + $0x190] sm:$0xff]
    %v70 = vld [vmem:[%s0 + $0x198] sm:$0xff]
    %v71 = vld [vmem:[%s0 + $0x1a0] sm:$0xff]
    %v72 = vld [vmem:[%s0 + $0x1a8] sm:$0xff]
    %v73 = vld [vmem:[%s0 + $0x1b0] sm:$0xff]
    %v74 = vld [vmem:[%s0 + $0x1b8] sm:$0xff]
    %v75 = vld [vmem:[%s0 + $0x1c0] sm:$0xff]
    %v76 = vld [vmem:[%s0 + $0x1c8] sm:$0xff]
    %v77 = vld [vmem:[%s0 + $0x1d0] sm:$0xff]
    %v78 = vld [vmem:[%s0 + $0x1d8] sm:$0xff]
    %v79 = vld [vmem:[%s0 + $0x1e0] sm:$0xff]
    %v80 = vld [vmem:[%s0 + $0x1e8] sm:$0xff]
    %v81 = vld [vmem:[%s0 + $0x1f0] sm:$0xff]
    %v82 = vld [vmem:[%s0 + $0x1f8] sm:$0xff]
    %v83 = vld [vmem:[%s1] sm:$0xf]
    %v84 = vld [vmem:[%s1 + $0x4] sm:$0xf]
    %v85 = vld [vmem:[%s1 + $0x8] sm:$0xf]
    %v86 = vld [vmem:[%s1 + $0xc] sm:$0xf]
    %v87 = vld [vmem:[%s1 + $0x10] sm:$0xf]
    %v88 = vld [vmem:[%s1 + $0x14] sm:$0xf]
    %v89 = vld [vmem:[%s1 + $0x18] sm:$0xf]
    %v90 = vld [vmem:[%s1 + $0x1c] sm:$0xf]
    %v91 = vld [vmem:[%s1 + $0x20] sm:$0xf]
    %v92 = vld [vmem:[%s1 + $0x24] sm:$0xf]
    %v93 = vld [vmem:[%s1 + $0x28] sm:$0xf]
    %v94 = vld [vmem:[%s1 + $0x2c] sm:$0xf]
    %v95 = vld [vmem:[%s1 + $0x30] sm:$0xf]
    %v96 = vld [vmem:[%s1 + $0x34] sm:$0xf]
    %v97 = vld [vmem:[%s1 + $0x38] sm:$0xf]
    %v98 = vld [vmem:[%s1 + $0x3c] sm:$0xf]
    %v99 = vld [vmem:[%s1 + $0x40] sm:$0xf]
    %v100 = vld [vmem:[%s1 + $0x44] sm:$0xf]
    %v101 = vld [vmem:[%s1 + $0x48] sm:$0xf]
    %v102 = vld [vmem:[%s1 + $0x4c] sm:$0xf]
    %v103 = vld [vmem:[%s1 + $0x50] sm:$0xf]
    %v104 = vld [vmem:[%s1 + $0x54] sm:$0xf]
    %v105 = vld [vmem:[%s1 + $0x58] sm:$0xf]
    %v106 = vld [vmem:[%s1 + $0x5c] sm:$0xf]
    %v107 = vld [vmem:[%s1 + $0x60] sm:$0xf]
    %v108 = vld [vmem:[%s1 + $0x64] sm:$0xf]
    %v109 = vld [vmem:[%s1 + $0x68] sm:$0xf]
    %v110 = vld [vmem:[%s1 + $0x6c] sm:$0xf]
    %v111 = vld [vmem:[%s1 + $0x70] sm:$0xf]
    %v112 = vld [vmem:[%s1 + $0x74] sm:$0xf]
    %v113 = vld [vmem:[%s1 + $0x78] sm:$0xf]
    %v114 = vld [vmem:[%s1 + $0x7c] sm:$0xf]
    %v179 = vunpack.c.l.b16 %v19
    %v180 = vunpack.c.h.b16 %v19
    %v181 = vunpack.c.l.b16 %v20
    %v182 = vunpack.c.h.b16 %v20
    %v183 = vunpack.c.l.b16 %v21
    %v184 = vunpack.c.h.b16 %v21
    %v185 = vunpack.c.l.b16 %v22
    %v186 = vunpack.c.h.b16 %v22
    %v187 = vunpack.c.l.b16 %v23
    %v188 = vunpack.c.h.b16 %v23
    %v189 = vunpack.c.l.b16 %v24
    %v190 = vunpack.c.h.b16 %v24
    %v191 = vunpack.c.l.b16 %v25
    %v192 = vunpack.c.h.b16 %v25
    %v193 = vunpack.c.l.b16 %v26
    %v194 = vunpack.c.h.b16 %v26
    %v195 = vunpack.c.l.b16 %v27
    %v196 = vunpack.c.h.b16 %v27
    %v197 = vunpack.c.l.b16 %v28
    %v198 = vunpack.c.h.b16 %v28
    %v199 = vunpack.c.l.b16 %v29
    %v200 = vunpack.c.h.b16 %v29
    %v201 = vunpack.c.l.b16 %v30
    %v202 = vunpack.c.h.b16 %v30
    %v203 = vunpack.c.l.b16 %v31
    %v204 = vunpack.c.h.b16 %v31
    %v205 = vunpack.c.l.b16 %v32
    %v206 = vunpack.c.h.b16 %v32
    %v207 = vunpack.c.l.b16 %v33
    %v208 = vunpack.c.h.b16 %v33
    %v209 = vunpack.c.l.b16 %v34
    %v210 = vunpack.c.h.b16 %v34
    %v211 = vunpack.c.l.b16 %v35
    %v212 = vunpack.c.h.b16 %v35
    %v213 = vunpack.c.l.b16 %v36
    %v214 = vunpack.c.h.b16 %v36
    %v215 = vunpack.c.l.b16 %v37
    %v216 = vunpack.c.h.b16 %v37
    %v217 = vunpack.c.l.b16 %v38
    %v218 = vunpack.c.h.b16 %v38
    %v219 = vunpack.c.l.b16 %v39
    %v220 = vunpack.c.h.b16 %v39
    %v221 = vunpack.c.l.b16 %v40
    %v222 = vunpack.c.h.b16 %v40
    %v223 = vunpack.c.l.b16 %v41
    %v224 = vunpack.c.h.b16 %v41
    %v225 = vunpack.c.l.b16 %v42
    %v226 = vunpack.c.h.b16 %v42
    %v227 = vunpack.c.l.b16 %v43
    %v228 = vunpack.c.h.b16 %v43
    %v229 = vunpack.c.l.b16 %v44
    %v230 = vunpack.c.h.b16 %v44
    %v231 = vunpack.c.l.b16 %v45
    %v232 = vunpack.c.h.b16 %v45
    %v233 = vunpack.c.l.b16 %v46
    %v234 = vunpack.c.h.b16 %v46
    %v235 = vunpack.c.l.b16 %v47
    %v236 = vunpack.c.h.b16 %v47
    %v237 = vunpack.c.l.b16 %v48
    %v238 = vunpack.c.h.b16 %v48
    %v239 = vunpack.c.l.b16 %v49
    %v240 = vunpack.c.h.b16 %v49
    %v241 = vunpack.c.l.b16 %v50
    %v242 = vunpack.c.h.b16 %v50
    %v243 = vunpack.c.l.b16 %v51
    %v244 = vunpack.c.h.b16 %v51
    %v245 = vunpack.c.l.b16 %v52
    %v246 = vunpack.c.h.b16 %v52
    %v247 = vunpack.c.l.b16 %v53
    %v248 = vunpack.c.h.b16 %v53
    %v249 = vunpack.c.l.b16 %v54
    %v250 = vunpack.c.h.b16 %v54
    %v251 = vunpack.c.l.b16 %v55
    %v252 = vunpack.c.h.b16 %v55
    %v253 = vunpack.c.l.b16 %v56
    %v254 = vunpack.c.h.b16 %v56
    %v255 = vunpack.c.l.b16 %v57
    %v256 = vunpack.c.h.b16 %v57
    %v257 = vunpack.c.l.b16 %v58
    %v258 = vunpack.c.h.b16 %v58
    %v259 = vunpack.c.l.b16 %v59
    %v260 = vunpack.c.h.b16 %v59
    %v261 = vunpack.c.l.b16 %v60
    %v262 = vunpack.c.h.b16 %v60
    %v263 = vunpack.c.l.b16 %v61
    %v264 = vunpack.c.h.b16 %v61
    %v265 = vunpack.c.l.b16 %v62
    %v266 = vunpack.c.h.b16 %v62
    %v267 = vunpack.c.l.b16 %v63
    %v268 = vunpack.c.h.b16 %v63
    %v269 = vunpack.c.l.b16 %v64
    %v270 = vunpack.c.h.b16 %v64
    %v271 = vunpack.c.l.b16 %v65
    %v272 = vunpack.c.h.b16 %v65
    %v273 = vunpack.c.l.b16 %v66
    %v274 = vunpack.c.h.b16 %v66
    %v275 = vunpack.c.l.b16 %v67
    %v276 = vunpack.c.h.b16 %v67
    %v277 = vunpack.c.l.b16 %v68
    %v278 = vunpack.c.h.b16 %v68
    %v279 = vunpack.c.l.b16 %v69
    %v280 = vunpack.c.h.b16 %v69
    %v281 = vunpack.c.l.b16 %v70
    %v282 = vunpack.c.h.b16 %v70
    %v283 = vunpack.c.l.b16 %v71
    %v284 = vunpack.c.h.b16 %v71
    %v285 = vunpack.c.l.b16 %v72
    %v286 = vunpack.c.h.b16 %v72
    %v287 = vunpack.c.l.b16 %v73
    %v288 = vunpack.c.h.b16 %v73
    %v289 = vunpack.c.l.b16 %v74
    %v290 = vunpack.c.h.b16 %v74
    %v291 = vunpack.c.l.b16 %v75
    %v292 = vunpack.c.h.b16 %v75
    %v293 = vunpack.c.l.b16 %v76
    %v294 = vunpack.c.h.b16 %v76
    %v295 = vunpack.c.l.b16 %v77
    %v296 = vunpack.c.h.b16 %v77
    %v297 = vunpack.c.l.b16 %v78
    %v298 = vunpack.c.h.b16 %v78
    %v299 = vunpack.c.l.b16 %v79
    %v300 = vunpack.c.h.b16 %v79
    %v301 = vunpack.c.l.b16 %v80
    %v302 = vunpack.c.h.b16 %v80
    %v303 = vunpack.c.l.b16 %v81
    %v304 = vunpack.c.h.b16 %v81
    %v305 = vunpack.c.l.b16 %v82
    %v306 = vunpack.c.h.b16 %v82
    %v307 = vpack.c.b16 %v181, %v179
    %v308 = vpack.c.b16 %v182, %v180
    %v309 = vpack.c.b16 %v185, %v183
    %v310 = vpack.c.b16 %v186, %v184
    %v311 = vpack.c.b16 %v189, %v187
    %v312 = vpack.c.b16 %v190, %v188
    %v313 = vpack.c.b16 %v193, %v191
    %v314 = vpack.c.b16 %v194, %v192
    %v315 = vpack.c.b16 %v197, %v195
    %v316 = vpack.c.b16 %v198, %v196
    %v317 = vpack.c.b16 %v201, %v199
    %v318 = vpack.c.b16 %v202, %v200
    %v319 = vpack.c.b16 %v205, %v203
    %v320 = vpack.c.b16 %v206, %v204
    %v321 = vpack.c.b16 %v209, %v207
    %v322 = vpack.c.b16 %v210, %v208
    %v323 = vpack.c.b16 %v213, %v211
    %v324 = vpack.c.b16 %v214, %v212
    %v325 = vpack.c.b16 %v217, %v215
    %v326 = vpack.c.b16 %v218, %v216
    %v327 = vpack.c.b16 %v221, %v219
    %v328 = vpack.c.b16 %v222, %v220
    %v329 = vpack.c.b16 %v225, %v223
    %v330 = vpack.c.b16 %v226, %v224
    %v331 = vpack.c.b16 %v229, %v227
    %v332 = vpack.c.b16 %v230, %v228
    %v333 = vpack.c.b16 %v233, %v231
    %v334 = vpack.c.b16 %v234, %v232
    %v335 = vpack.c.b16 %v237, %v235
    %v336 = vpack.c.b16 %v238, %v236
    %v337 = vpack.c.b16 %v241, %v239
    %v338 = vpack.c.b16 %v242, %v240
    %v339 = vpack.c.b16 %v245, %v243
    %v340 = vpack.c.b16 %v246, %v244
    %v341 = vpack.c.b16 %v249, %v247
    %v342 = vpack.c.b16 %v250, %v248
    %v343 = vpack.c.b16 %v253, %v251
    %v344 = vpack.c.b16 %v254, %v252
    %v345 = vpack.c.b16 %v257, %v255
    %v346 = vpack.c.b16 %v258, %v256
    %v347 = vpack.c.b16 %v261, %v259
    %v348 = vpack.c.b16 %v262, %v260
    %v349 = vpack.c.b16 %v265, %v263
    %v350 = vpack.c.b16 %v266, %v264
    %v351 = vpack.c.b16 %v269, %v267
    %v352 = vpack.c.b16 %v270, %v268
    %v353 = vpack.c.b16 %v273, %v271
    %v354 = vpack.c.b16 %v274, %v272
    %v355 = vpack.c.b16 %v277, %v275
    %v356 = vpack.c.b16 %v278, %v276
    %v357 = vpack.c.b16 %v281, %v279
    %v358 = vpack.c.b16 %v282, %v280
    %v359 = vpack.c.b16 %v285, %v283
    %v360 = vpack.c.b16 %v286, %v284
    %v361 = vpack.c.b16 %v289, %v287
    %v362 = vpack.c.b16 %v290, %v288
    %v363 = vpack.c.b16 %v293, %v291
    %v364 = vpack.c.b16 %v294, %v292
    %v365 = vpack.c.b16 %v297, %v295
    %v366 = vpack.c.b16 %v298, %v296
    %v367 = vpack.c.b16 %v301, %v299
    %v368 = vpack.c.b16 %v302, %v300
    %v369 = vpack.c.b16 %v305, %v303
    %v370 = vpack.c.b16 %v306, %v304
    %v467 = vunpack.c.l.b16 %v83
    %v468 = vunpack.c.l.b16 %v84
    %v469 = vunpack.c.l.b16 %v85
    %v470 = vunpack.c.l.b16 %v86
    %v471 = vunpack.c.l.b16 %v87
    %v472 = vunpack.c.l.b16 %v88
    %v473 = vunpack.c.l.b16 %v89
    %v474 = vunpack.c.l.b16 %v90
    %v475 = vunpack.c.l.b16 %v91
    %v476 = vunpack.c.l.b16 %v92
    %v477 = vunpack.c.l.b16 %v93
    %v478 = vunpack.c.l.b16 %v94
    %v479 = vunpack.c.l.b16 %v95
    %v480 = vunpack.c.l.b16 %v96
    %v481 = vunpack.c.l.b16 %v97
    %v482 = vunpack.c.l.b16 %v98
    %v483 = vunpack.c.l.b16 %v99
    %v484 = vunpack.c.l.b16 %v100
    %v485 = vunpack.c.l.b16 %v101
    %v486 = vunpack.c.l.b16 %v102
    %v487 = vunpack.c.l.b16 %v103
    %v488 = vunpack.c.l.b16 %v104
    %v489 = vunpack.c.l.b16 %v105
    %v490 = vunpack.c.l.b16 %v106
    %v491 = vunpack.c.l.b16 %v107
    %v492 = vunpack.c.l.b16 %v108
    %v493 = vunpack.c.l.b16 %v109
    %v494 = vunpack.c.l.b16 %v110
    %v495 = vunpack.c.l.b16 %v111
    %v496 = vunpack.c.l.b16 %v112
    %v497 = vunpack.c.l.b16 %v113
    %v498 = vunpack.c.l.b16 %v114
    %v499 = vpack.c.b16 %v468, %v467
    %v500 = vpack.c.b16 %v470, %v469
    %v501 = vpack.c.b16 %v472, %v471
    %v502 = vpack.c.b16 %v474, %v473
    %v503 = vpack.c.b16 %v476, %v475
    %v504 = vpack.c.b16 %v478, %v477
    %v505 = vpack.c.b16 %v480, %v479
    %v506 = vpack.c.b16 %v482, %v481
    %v507 = vpack.c.b16 %v484, %v483
    %v508 = vpack.c.b16 %v486, %v485
    %v509 = vpack.c.b16 %v488, %v487
    %v510 = vpack.c.b16 %v490, %v489
    %v511 = vpack.c.b16 %v492, %v491
    %v512 = vpack.c.b16 %v494, %v493
    %v513 = vpack.c.b16 %v496, %v495
    %v514 = vpack.c.b16 %v498, %v497
    %531 = vmatprep.subr.bf16.mxu0 0
    %532 = vmatpush1.bf16.msra.mxu0 %v506
    %533 = vmatprep.subr.bf16.mxu0 0
    %534 = vmatpush1.bf16.msra.mxu0 %v505
    %535 = vmatprep.subr.bf16.mxu0 0
    %536 = vmatpush1.bf16.msra.mxu0 %v504
    %537 = vmatprep.subr.bf16.mxu0 0
    %538 = vmatpush1.bf16.msra.mxu0 %v503
    %539 = vmatprep.subr.bf16.mxu0 0
    %540 = vmatpush1.bf16.msra.mxu0 %v502
    %541 = vmatprep.subr.bf16.mxu0 0
    %542 = vmatpush1.bf16.msra.mxu0 %v501
    %543 = vmatprep.subr.bf16.mxu0 0
    %544 = vmatpush1.bf16.msra.mxu0 %v500
    %545 = vmatprep.subr.bf16.mxu0 0
    %546 = vmatpush1.bf16.msra.mxu0 %v499
    %547 = vmatprep.subr.bf16.mxu0 0
    %548 = vmatpush2.bf16.msra.mxu0 %v514
    %549 = vmatprep.subr.bf16.mxu0 0
    %550 = vmatpush2.bf16.msra.mxu0 %v513
    %551 = vmatprep.subr.bf16.mxu0 0
    %552 = vmatpush2.bf16.msra.mxu0 %v512
    %553 = vmatprep.subr.bf16.mxu0 0
    %554 = vmatpush2.bf16.msra.mxu0 %v511
    %555 = vmatprep.subr.bf16.mxu0 0
    %556 = vmatpush2.bf16.msra.mxu0 %v510
    %557 = vmatprep.subr.bf16.mxu0 0
    %558 = vmatpush2.bf16.msra.mxu0 %v509
    %559 = vmatprep.subr.bf16.mxu0 0
    %560 = vmatpush2.bf16.msra.mxu0 %v508
    %561 = vmatprep.subr.bf16.mxu0 0
    %562 = vmatpush2.bf16.msra.mxu0 %v507
    %563 = vmatprep.mubr.bf16.mxu0 %v308
    %564 = vmatmul.mubr.bf16.gmra.mxu0 %v307
    %v565 = vpop.f32.mrf.mxu0
    %v566 = vadd.f32 0.0, %v565
    %v567 = vpop.f32.mrf.mxu0
    %v568 = vpop.f32.mrf.mxu0
    %v569 = vadd.f32 0.0, %v568
    %v570 = vpop.f32.mrf.mxu0
    %571 = vmatprep.mubr.bf16.mxu0 %v310
    %572 = vmatmul.mubr.bf16.gmra.mxu0 %v309
    %v573 = vpop.f32.mrf.mxu0
    %v574 = vadd.f32 0.0, %v573
    %v575 = vpop.f32.mrf.mxu0
    %v576 = vpop.f32.mrf.mxu0
    %v577 = vadd.f32 0.0, %v576
    %v578 = vpop.f32.mrf.mxu0
    %579 = vmatprep.mubr.bf16.mxu0 %v312
    %580 = vmatmul.mubr.bf16.gmra.mxu0 %v311
    %v581 = vpop.f32.mrf.mxu0
    %v582 = vadd.f32 0.0, %v581
    %v583 = vpop.f32.mrf.mxu0
    %v584 = vpop.f32.mrf.mxu0
    %v585 = vadd.f32 0.0, %v584
    %v586 = vpop.f32.mrf.mxu0
    %587 = vmatprep.mubr.bf16.mxu0 %v314
    %588 = vmatmul.mubr.bf16.gmra.mxu0 %v313
    %v589 = vpop.f32.mrf.mxu0
    %v590 = vadd.f32 0.0, %v589
    %v591 = vpop.f32.mrf.mxu0
    %v592 = vpop.f32.mrf.mxu0
    %v593 = vadd.f32 0.0, %v592
    %v594 = vpop.f32.mrf.mxu0
    %595 = vmatprep.mubr.bf16.mxu0 %v316
    %596 = vmatmul.mubr.bf16.gmra.mxu0 %v315
    %v597 = vpop.f32.mrf.mxu0
    %v598 = vadd.f32 0.0, %v597
    %v599 = vpop.f32.mrf.mxu0
    %v600 = vpop.f32.mrf.mxu0
    %v601 = vadd.f32 0.0, %v600
    %v602 = vpop.f32.mrf.mxu0
    %603 = vmatprep.mubr.bf16.mxu0 %v318
    %604 = vmatmul.mubr.bf16.gmra.mxu0 %v317
    %v605 = vpop.f32.mrf.mxu0
    %v606 = vadd.f32 0.0, %v605
    %v607 = vpop.f32.mrf.mxu0
    %v608 = vpop.f32.mrf.mxu0
    %v609 = vadd.f32 0.0, %v608
    %v610 = vpop.f32.mrf.mxu0
    %611 = vmatprep.mubr.bf16.mxu0 %v320
    %612 = vmatmul.mubr.bf16.gmra.mxu0 %v319
    %v613 = vpop.f32.mrf.mxu0
    %v614 = vadd.f32 0.0, %v613
    %v615 = vpop.f32.mrf.mxu0
    %v616 = vpop.f32.mrf.mxu0
    %v617 = vadd.f32 0.0, %v616
    %v618 = vpop.f32.mrf.mxu0
    %619 = vmatprep.mubr.bf16.mxu0 %v322
    %620 = vmatmul.mubr.bf16.gmra.mxu0 %v321
    %v621 = vpop.f32.mrf.mxu0
    %v622 = vadd.f32 0.0, %v621
    %v623 = vpop.f32.mrf.mxu0
    %v624 = vpop.f32.mrf.mxu0
    %v625 = vadd.f32 0.0, %v624
    %v626 = vpop.f32.mrf.mxu0
    %627 = vmatprep.mubr.bf16.mxu0 %v324
    %628 = vmatmul.mubr.bf16.gmra.mxu0 %v323
    %v629 = vpop.f32.mrf.mxu0
    %v630 = vadd.f32 0.0, %v629
    %v631 = vpop.f32.mrf.mxu0
    %v632 = vpop.f32.mrf.mxu0
    %v633 = vadd.f32 0.0, %v632
    %v634 = vpop.f32.mrf.mxu0
    %635 = vmatprep.mubr.bf16.mxu0 %v326
    %636 = vmatmul.mubr.bf16.gmra.mxu0 %v325
    %v637 = vpop.f32.mrf.mxu0
    %v638 = vadd.f32 0.0, %v637
    %v639 = vpop.f32.mrf.mxu0
    %v640 = vpop.f32.mrf.mxu0
    %v641 = vadd.f32 0.0, %v640
    %v642 = vpop.f32.mrf.mxu0
    %643 = vmatprep.mubr.bf16.mxu0 %v328
    %644 = vmatmul.mubr.bf16.gmra.mxu0 %v327
    %v645 = vpop.f32.mrf.mxu0
    %v646 = vadd.f32 0.0, %v645
    %v647 = vpop.f32.mrf.mxu0
    %v648 = vpop.f32.mrf.mxu0
    %v649 = vadd.f32 0.0, %v648
    %v650 = vpop.f32.mrf.mxu0
    %651 = vmatprep.mubr.bf16.mxu0 %v330
    %652 = vmatmul.mubr.bf16.gmra.mxu0 %v329
    %v653 = vpop.f32.mrf.mxu0
    %v654 = vadd.f32 0.0, %v653
    %v655 = vpop.f32.mrf.mxu0
    %v656 = vpop.f32.mrf.mxu0
    %v657 = vadd.f32 0.0, %v656
    %v658 = vpop.f32.mrf.mxu0
    %659 = vmatprep.mubr.bf16.mxu0 %v332
    %660 = vmatmul.mubr.bf16.gmra.mxu0 %v331
    %v661 = vpop.f32.mrf.mxu0
    %v662 = vadd.f32 0.0, %v661
    %v663 = vpop.f32.mrf.mxu0
    %v664 = vpop.f32.mrf.mxu0
    %v665 = vadd.f32 0.0, %v664
    %v666 = vpop.f32.mrf.mxu0
    %667 = vmatprep.mubr.bf16.mxu0 %v334
    %668 = vmatmul.mubr.bf16.gmra.mxu0 %v333
    %v669 = vpop.f32.mrf.mxu0
    %v670 = vadd.f32 0.0, %v669
    %v671 = vpop.f32.mrf.mxu0
    %v672 = vpop.f32.mrf.mxu0
    %v673 = vadd.f32 0.0, %v672
    %v674 = vpop.f32.mrf.mxu0
    %675 = vmatprep.mubr.bf16.mxu0 %v336
    %676 = vmatmul.mubr.bf16.gmra.mxu0 %v335
    %v677 = vpop.f32.mrf.mxu0
    %v678 = vadd.f32 0.0, %v677
    %v679 = vpop.f32.mrf.mxu0
    %v680 = vpop.f32.mrf.mxu0
    %v681 = vadd.f32 0.0, %v680
    %v682 = vpop.f32.mrf.mxu0
    %683 = vmatprep.mubr.bf16.mxu0 %v338
    %684 = vmatmul.mubr.bf16.gmra.mxu0 %v337
    %v685 = vpop.f32.mrf.mxu0
    %v686 = vadd.f32 0.0, %v685
    %v687 = vpop.f32.mrf.mxu0
    %v688 = vpop.f32.mrf.mxu0
    %v689 = vadd.f32 0.0, %v688
    %v690 = vpop.f32.mrf.mxu0
    %691 = vmatprep.mubr.bf16.mxu0 %v340
    %692 = vmatmul.mubr.bf16.gmra.mxu0 %v339
    %v693 = vpop.f32.mrf.mxu0
    %v694 = vadd.f32 0.0, %v693
    %v695 = vpop.f32.mrf.mxu0
    %v696 = vpop.f32.mrf.mxu0
    %v697 = vadd.f32 0.0, %v696
    %v698 = vpop.f32.mrf.mxu0
    %699 = vmatprep.mubr.bf16.mxu0 %v342
    %700 = vmatmul.mubr.bf16.gmra.mxu0 %v341
    %v701 = vpop.f32.mrf.mxu0
    %v702 = vadd.f32 0.0, %v701
    %v703 = vpop.f32.mrf.mxu0
    %v704 = vpop.f32.mrf.mxu0
    %v705 = vadd.f32 0.0, %v704
    %v706 = vpop.f32.mrf.mxu0
    %707 = vmatprep.mubr.bf16.mxu0 %v344
    %708 = vmatmul.mubr.bf16.gmra.mxu0 %v343
    %v709 = vpop.f32.mrf.mxu0
    %v710 = vadd.f32 0.0, %v709
    %v711 = vpop.f32.mrf.mxu0
    %v712 = vpop.f32.mrf.mxu0
    %v713 = vadd.f32 0.0, %v712
    %v714 = vpop.f32.mrf.mxu0
    %715 = vmatprep.mubr.bf16.mxu0 %v346
    %716 = vmatmul.mubr.bf16.gmra.mxu0 %v345
    %v717 = vpop.f32.mrf.mxu0
    %v718 = vadd.f32 0.0, %v717
    %v719 = vpop.f32.mrf.mxu0
    %v720 = vpop.f32.mrf.mxu0
    %v721 = vadd.f32 0.0, %v720
    %v722 = vpop.f32.mrf.mxu0
    %723 = vmatprep.mubr.bf16.mxu0 %v348
    %724 = vmatmul.mubr.bf16.gmra.mxu0 %v347
    %v725 = vpop.f32.mrf.mxu0
    %v726 = vadd.f32 0.0, %v725
    %v727 = vpop.f32.mrf.mxu0
    %v728 = vpop.f32.mrf.mxu0
    %v729 = vadd.f32 0.0, %v728
    %v730 = vpop.f32.mrf.mxu0
    %731 = vmatprep.mubr.bf16.mxu0 %v350
    %732 = vmatmul.mubr.bf16.gmra.mxu0 %v349
    %v733 = vpop.f32.mrf.mxu0
    %v734 = vadd.f32 0.0, %v733
    %v735 = vpop.f32.mrf.mxu0
    %v736 = vpop.f32.mrf.mxu0
    %v737 = vadd.f32 0.0, %v736
    %v738 = vpop.f32.mrf.mxu0
    %739 = vmatprep.mubr.bf16.mxu0 %v352
    %740 = vmatmul.mubr.bf16.gmra.mxu0 %v351
    %v741 = vpop.f32.mrf.mxu0
    %v742 = vadd.f32 0.0, %v741
    %v743 = vpop.f32.mrf.mxu0
    %v744 = vpop.f32.mrf.mxu0
    %v745 = vadd.f32 0.0, %v744
    %v746 = vpop.f32.mrf.mxu0
    %747 = vmatprep.mubr.bf16.mxu0 %v354
    %748 = vmatmul.mubr.bf16.gmra.mxu0 %v353
    %v749 = vpop.f32.mrf.mxu0
    %v750 = vadd.f32 0.0, %v749
    %v751 = vpop.f32.mrf.mxu0
    %v752 = vpop.f32.mrf.mxu0
    %v753 = vadd.f32 0.0, %v752
    %v754 = vpop.f32.mrf.mxu0
    %755 = vmatprep.mubr.bf16.mxu0 %v356
    %756 = vmatmul.mubr.bf16.gmra.mxu0 %v355
    %v757 = vpop.f32.mrf.mxu0
    %v758 = vadd.f32 0.0, %v757
    %v759 = vpop.f32.mrf.mxu0
    %v760 = vpop.f32.mrf.mxu0
    %v761 = vadd.f32 0.0, %v760
    %v762 = vpop.f32.mrf.mxu0
    %763 = vmatprep.mubr.bf16.mxu0 %v358
    %764 = vmatmul.mubr.bf16.gmra.mxu0 %v357
    %v765 = vpop.f32.mrf.mxu0
    %v766 = vadd.f32 0.0, %v765
    %v767 = vpop.f32.mrf.mxu0
    %v768 = vpop.f32.mrf.mxu0
    %v769 = vadd.f32 0.0, %v768
    %v770 = vpop.f32.mrf.mxu0
    %771 = vmatprep.mubr.bf16.mxu0 %v360
    %772 = vmatmul.mubr.bf16.gmra.mxu0 %v359
    %v773 = vpop.f32.mrf.mxu0
    %v774 = vadd.f32 0.0, %v773
    %v775 = vpop.f32.mrf.mxu0
    %v776 = vpop.f32.mrf.mxu0
    %v777 = vadd.f32 0.0, %v776
    %v778 = vpop.f32.mrf.mxu0
    %779 = vmatprep.mubr.bf16.mxu0 %v362
    %780 = vmatmul.mubr.bf16.gmra.mxu0 %v361
    %v781 = vpop.f32.mrf.mxu0
    %v782 = vadd.f32 0.0, %v781
    %v783 = vpop.f32.mrf.mxu0
    %v784 = vpop.f32.mrf.mxu0
    %v785 = vadd.f32 0.0, %v784
    %v786 = vpop.f32.mrf.mxu0
    %787 = vmatprep.mubr.bf16.mxu0 %v364
    %788 = vmatmul.mubr.bf16.gmra.mxu0 %v363
    %v789 = vpop.f32.mrf.mxu0
    %v790 = vadd.f32 0.0, %v789
    %v791 = vpop.f32.mrf.mxu0
    %v792 = vpop.f32.mrf.mxu0
    %v793 = vadd.f32 0.0, %v792
    %v794 = vpop.f32.mrf.mxu0
    %795 = vmatprep.mubr.bf16.mxu0 %v366
    %796 = vmatmul.mubr.bf16.gmra.mxu0 %v365
    %v797 = vpop.f32.mrf.mxu0
    %v798 = vadd.f32 0.0, %v797
    %v799 = vpop.f32.mrf.mxu0
    %v800 = vpop.f32.mrf.mxu0
    %v801 = vadd.f32 0.0, %v800
    %v802 = vpop.f32.mrf.mxu0
    %803 = vmatprep.mubr.bf16.mxu0 %v368
    %804 = vmatmul.mubr.bf16.gmra.mxu0 %v367
    %v805 = vpop.f32.mrf.mxu0
    %v806 = vadd.f32 0.0, %v805
    %v807 = vpop.f32.mrf.mxu0
    %v808 = vpop.f32.mrf.mxu0
    %v809 = vadd.f32 0.0, %v808
    %v810 = vpop.f32.mrf.mxu0
    %811 = vmatprep.mubr.bf16.mxu0 %v370
    %812 = vmatmul.mubr.bf16.gmra.mxu0 %v369
    %v813 = vpop.f32.mrf.mxu0
    %v814 = vadd.f32 0.0, %v813
    %v815 = vpop.f32.mrf.mxu0
    %v816 = vpop.f32.mrf.mxu0
    %v817 = vadd.f32 0.0, %v816
    %v818 = vpop.f32.mrf.mxu0
    %819 = vdwg.mxu0
    %v820 = vld [vmem:[%s2] sm:$0x1]
    %v821 = vld [vmem:[%s3] sm:$0x1]
    %v822 = vadd.f32 %v566, %v569
    %v823 = vadd.f32 %v822, %v574
    %v824 = vadd.f32 %v823, %v577
    %v825 = vadd.f32 %v824, %v582
    %v826 = vadd.f32 %v825, %v585
    %v827 = vadd.f32 %v826, %v590
    %v828 = vadd.f32 %v827, %v593
    %v829 = vadd.f32 %v828, %v598
    %v830 = vadd.f32 %v829, %v601
    %v831 = vadd.f32 %v830, %v606
    %v832 = vadd.f32 %v831, %v609
    %v833 = vadd.f32 %v832, %v614
    %v834 = vadd.f32 %v833, %v617
    %v835 = vadd.f32 %v834, %v622
    %v836 = vadd.f32 %v835, %v625
    %v837 = vadd.f32 %v836, %v630
    %v838 = vadd.f32 %v837, %v633
    %v839 = vadd.f32 %v838, %v638
    %v840 = vadd.f32 %v839, %v641
    %v841 = vadd.f32 %v840, %v646
    %v842 = vadd.f32 %v841, %v649
    %v843 = vadd.f32 %v842, %v654
    %v844 = vadd.f32 %v843, %v657
    %v845 = vadd.f32 %v844, %v662
    %v846 = vadd.f32 %v845, %v665
    %v847 = vadd.f32 %v846, %v670
    %v848 = vadd.f32 %v847, %v673
    %v849 = vadd.f32 %v848, %v678
    %v850 = vadd.f32 %v849, %v681
    %v851 = vadd.f32 %v850, %v686
    %v852 = vadd.f32 %v851, %v689
    %v853 = vadd.f32 %v852, %v694
    %v854 = vadd.f32 %v853, %v697
    %v855 = vadd.f32 %v854, %v702
    %v856 = vadd.f32 %v855, %v705
    %v857 = vadd.f32 %v856, %v710
    %v858 = vadd.f32 %v857, %v713
    %v859 = vadd.f32 %v858, %v718
    %v860 = vadd.f32 %v859, %v721
    %v861 = vadd.f32 %v860, %v726
    %v862 = vadd.f32 %v861, %v729
    %v863 = vadd.f32 %v862, %v734
    %v864 = vadd.f32 %v863, %v737
    %v865 = vadd.f32 %v864, %v742
    %v866 = vadd.f32 %v865, %v745
    %v867 = vadd.f32 %v866, %v750
    %v868 = vadd.f32 %v867, %v753
    %v869 = vadd.f32 %v868, %v758
    %v870 = vadd.f32 %v869, %v761
    %v871 = vadd.f32 %v870, %v766
    %v872 = vadd.f32 %v871, %v769
    %v873 = vadd.f32 %v872, %v774
    %v874 = vadd.f32 %v873, %v777
    %v875 = vadd.f32 %v874, %v782
    %v876 = vadd.f32 %v875, %v785
    %v877 = vadd.f32 %v876, %v790
    %v878 = vadd.f32 %v877, %v793
    %v879 = vadd.f32 %v878, %v798
    %v880 = vadd.f32 %v879, %v801
    %v881 = vadd.f32 %v880, %v806
    %v882 = vadd.f32 %v881, %v809
    %v883 = vadd.f32 %v882, %v814
    %v884 = vadd.f32 %v883, %v817
    %v885 = vrot.slane %v884, 4
    %v886 = vadd.f32 %v884, %v885
    %v887 = vrot.slane %v886, 2
    %v888 = vadd.f32 %v886, %v887
    %v889 = vrot.slane %v888, 1
    %v890 = vadd.f32 %v888, %v889
    %v891 = vmul.f32 %v566, %v566
    %v892 = vmul.f32 %v569, %v569
    %v893 = vmul.f32 %v574, %v574
    %v894 = vmul.f32 %v577, %v577
    %v895 = vmul.f32 %v582, %v582
    %v896 = vmul.f32 %v585, %v585
    %v897 = vmul.f32 %v590, %v590
    %v898 = vmul.f32 %v593, %v593
    %v899 = vmul.f32 %v598, %v598
    %v900 = vmul.f32 %v601, %v601
    %v901 = vmul.f32 %v606, %v606
    %v902 = vmul.f32 %v609, %v609
    %v903 = vmul.f32 %v614, %v614
    %v904 = vmul.f32 %v617, %v617
    %v905 = vmul.f32 %v622, %v622
    %v906 = vmul.f32 %v625, %v625
    %v907 = vmul.f32 %v630, %v630
    %v908 = vmul.f32 %v633, %v633
    %v909 = vmul.f32 %v638, %v638
    %v910 = vmul.f32 %v641, %v641
    %v911 = vmul.f32 %v646, %v646
    %v912 = vmul.f32 %v649, %v649
    %v913 = vmul.f32 %v654, %v654
    %v914 = vmul.f32 %v657, %v657
    %v915 = vmul.f32 %v662, %v662
    %v916 = vmul.f32 %v665, %v665
    %v917 = vmul.f32 %v670, %v670
    %v918 = vmul.f32 %v673, %v673
    %v919 = vmul.f32 %v678, %v678
    %v920 = vmul.f32 %v681, %v681
    %v921 = vmul.f32 %v686, %v686
    %v922 = vmul.f32 %v689, %v689
    %v923 = vmul.f32 %v694, %v694
    %v924 = vmul.f32 %v697, %v697
    %v925 = vmul.f32 %v702, %v702
    %v926 = vmul.f32 %v705, %v705
    %v927 = vmul.f32 %v710, %v710
    %v928 = vmul.f32 %v713, %v713
    %v929 = vmul.f32 %v718, %v718
    %v930 = vmul.f32 %v721, %v721
    %v931 = vmul.f32 %v726, %v726
    %v932 = vmul.f32 %v729, %v729
    %v933 = vmul.f32 %v734, %v734
    %v934 = vmul.f32 %v737, %v737
    %v935 = vmul.f32 %v742, %v742
    %v936 = vmul.f32 %v745, %v745
    %v937 = vmul.f32 %v750, %v750
    %v938 = vmul.f32 %v753, %v753
    %v939 = vmul.f32 %v758, %v758
    %v940 = vmul.f32 %v761, %v761
    %v941 = vmul.f32 %v766, %v766
    %v942 = vmul.f32 %v769, %v769
    %v943 = vmul.f32 %v774, %v774
    %v944 = vmul.f32 %v777, %v777
    %v945 = vmul.f32 %v782, %v782
    %v946 = vmul.f32 %v785, %v785
    %v947 = vmul.f32 %v790, %v790
    %v948 = vmul.f32 %v793, %v793
    %v949 = vmul.f32 %v798, %v798
    %v950 = vmul.f32 %v801, %v801
    %v951 = vmul.f32 %v806, %v806
    %v952 = vmul.f32 %v809, %v809
    %v953 = vmul.f32 %v814, %v814
    %v954 = vmul.f32 %v817, %v817
    %v955 = vadd.f32 %v891, %v892
    %v956 = vadd.f32 %v955, %v893
    %v957 = vadd.f32 %v956, %v894
    %v958 = vadd.f32 %v957, %v895
    %v959 = vadd.f32 %v958, %v896
    %v960 = vadd.f32 %v959, %v897
    %v961 = vadd.f32 %v960, %v898
    %v962 = vadd.f32 %v961, %v899
    %v963 = vadd.f32 %v962, %v900
    %v964 = vadd.f32 %v963, %v901
    %v965 = vadd.f32 %v964, %v902
    %v966 = vadd.f32 %v965, %v903
    %v967 = vadd.f32 %v966, %v904
    %v968 = vadd.f32 %v967, %v905
    %v969 = vadd.f32 %v968, %v906
    %v970 = vadd.f32 %v969, %v907
    %v971 = vadd.f32 %v970, %v908
    %v972 = vadd.f32 %v971, %v909
    %v973 = vadd.f32 %v972, %v910
    %v974 = vadd.f32 %v973, %v911
    %v975 = vadd.f32 %v974, %v912
    %v976 = vadd.f32 %v975, %v913
    %v977 = vadd.f32 %v976, %v914
    %v978 = vadd.f32 %v977, %v915
    %v979 = vadd.f32 %v978, %v916
    %v980 = vadd.f32 %v979, %v917
    %v981 = vadd.f32 %v980, %v918
    %v982 = vadd.f32 %v981, %v919
    %v983 = vadd.f32 %v982, %v920
    %v984 = vadd.f32 %v983, %v921
    %v985 = vadd.f32 %v984, %v922
    %v986 = vadd.f32 %v985, %v923
    %v987 = vadd.f32 %v986, %v924
    %v988 = vadd.f32 %v987, %v925
    %v989 = vadd.f32 %v988, %v926
    %v990 = vadd.f32 %v989, %v927
    %v991 = vadd.f32 %v990, %v928
    %v992 = vadd.f32 %v991, %v929
    %v993 = vadd.f32 %v992, %v930
    %v994 = vadd.f32 %v993, %v931
    %v995 = vadd.f32 %v994, %v932
    %v996 = vadd.f32 %v995, %v933
    %v997 = vadd.f32 %v996, %v934
    %v998 = vadd.f32 %v997, %v935
    %v999 = vadd.f32 %v998, %v936
    %v1000 = vadd.f32 %v999, %v937
    %v1001 = vadd.f32 %v1000, %v938
    %v1002 = vadd.f32 %v1001, %v939
    %v1003 = vadd.f32 %v1002, %v940
    %v1004 = vadd.f32 %v1003, %v941
    %v1005 = vadd.f32 %v1004, %v942
    %v1006 = vadd.f32 %v1005, %v943
    %v1007 = vadd.f32 %v1006, %v944
    %v1008 = vadd.f32 %v1007, %v945
    %v1009 = vadd.f32 %v1008, %v946
    %v1010 = vadd.f32 %v1009, %v947
    %v1011 = vadd.f32 %v1010, %v948
    %v1012 = vadd.f32 %v1011, %v949
    %v1013 = vadd.f32 %v1012, %v950
    %v1014 = vadd.f32 %v1013, %v951
    %v1015 = vadd.f32 %v1014, %v952
    %v1016 = vadd.f32 %v1015, %v953
    %v1017 = vadd.f32 %v1016, %v954
    %v1018 = vrot.slane %v1017, 4
    %v1019 = vadd.f32 %v1017, %v1018
    %v1020 = vrot.slane %v1019, 2
    %v1021 = vadd.f32 %v1019, %v1020
    %v1022 = vrot.slane %v1021, 1
    %v1023 = vadd.f32 %v1021, %v1022
    %v1024 = vmul.f32 %v890, 0.001953125
    %v1025 = vmul.f32 %v1023, 0.001953125
    %v1026 = vmul.f32 %v1024, %v1024
    %v1027 = vsub.f32 %v1025, %v1026
    %v1028 = vmax.f32 %v1027, 0.0
    %v1029 = vadd.f32 %v1028, 1e-05
    %v1030 = vrsqrt.pop %v1029
    %v1031 = vmul.f32 %v1030, %v820
    %v1032 = vsub.f32 %v566, %v1024
    %v1033 = vsub.f32 %v569, %v1024
    %v1034 = vsub.f32 %v574, %v1024
    %v1035 = vsub.f32 %v577, %v1024
    %v1036 = vsub.f32 %v582, %v1024
    %v1037 = vsub.f32 %v585, %v1024
    %v1038 = vsub.f32 %v590, %v1024
    %v1039 = vsub.f32 %v593, %v1024
    %v1040 = vsub.f32 %v598, %v1024
    %v1041 = vsub.f32 %v601, %v1024
    %v1042 = vsub.f32 %v606, %v1024
    %v1043 = vsub.f32 %v609, %v1024
    %v1044 = vsub.f32 %v614, %v1024
    %v1045 = vsub.f32 %v617, %v1024
    %v1046 = vsub.f32 %v622, %v1024
    %v1047 = vsub.f32 %v625, %v1024
    %v1048 = vsub.f32 %v630, %v1024
    %v1049 = vsub.f32 %v633, %v1024
    %v1050 = vsub.f32 %v638, %v1024
    %v1051 = vsub.f32 %v641, %v1024
    %v1052 = vsub.f32 %v646, %v1024
    %v1053 = vsub.f32 %v649, %v1024
    %v1054 = vsub.f32 %v654, %v1024
    %v1055 = vsub.f32 %v657, %v1024
    %v1056 = vsub.f32 %v662, %v1024
    %v1057 = vsub.f32 %v665, %v1024
    %v1058 = vsub.f32 %v670, %v1024
    %v1059 = vsub.f32 %v673, %v1024
    %v1060 = vsub.f32 %v678, %v1024
    %v1061 = vsub.f32 %v681, %v1024
    %v1062 = vsub.f32 %v686, %v1024
    %v1063 = vsub.f32 %v689, %v1024
    %v1064 = vsub.f32 %v694, %v1024
    %v1065 = vsub.f32 %v697, %v1024
    %v1066 = vsub.f32 %v702, %v1024
    %v1067 = vsub.f32 %v705, %v1024
    %v1068 = vsub.f32 %v710, %v1024
    %v1069 = vsub.f32 %v713, %v1024
    %v1070 = vsub.f32 %v718, %v1024
    %v1071 = vsub.f32 %v721, %v1024
    %v1072 = vsub.f32 %v726, %v1024
    %v1073 = vsub.f32 %v729, %v1024
    %v1074 = vsub.f32 %v734, %v1024
    %v1075 = vsub.f32 %v737, %v1024
    %v1076 = vsub.f32 %v742, %v1024
    %v1077 = vsub.f32 %v745, %v1024
    %v1078 = vsub.f32 %v750, %v1024
    %v1079 = vsub.f32 %v753, %v1024
    %v1080 = vsub.f32 %v758, %v1024
    %v1081 = vsub.f32 %v761, %v1024
    %v1082 = vsub.f32 %v766, %v1024
    %v1083 = vsub.f32 %v769, %v1024
    %v1084 = vsub.f32 %v774, %v1024
    %v1085 = vsub.f32 %v777, %v1024
    %v1086 = vsub.f32 %v782, %v1024
    %v1087 = vsub.f32 %v785, %v1024
    %v1088 = vsub.f32 %v790, %v1024
    %v1089 = vsub.f32 %v793, %v1024
    %v1090 = vsub.f32 %v798, %v1024
    %v1091 = vsub.f32 %v801, %v1024
    %v1092 = vsub.f32 %v806, %v1024
    %v1093 = vsub.f32 %v809, %v1024
    %v1094 = vsub.f32 %v814, %v1024
    %v1095 = vsub.f32 %v817, %v1024
    %v1096 = vlaneseq
    %v1097 = vshrl.u32 %v1096, 7
    %v1098 = vsub.s32 0, %v1097
    %v1099 = vrot.slane %v1031, %v1098
    %v1100 = vmul.f32 %v1032, %v1099
    %v1101 = vmul.f32 %v1033, %v1099
    %v1102 = vmul.f32 %v1034, %v1099
    %v1103 = vmul.f32 %v1035, %v1099
    %v1104 = vmul.f32 %v1036, %v1099
    %v1105 = vmul.f32 %v1037, %v1099
    %v1106 = vmul.f32 %v1038, %v1099
    %v1107 = vmul.f32 %v1039, %v1099
    %v1108 = vmul.f32 %v1040, %v1099
    %v1109 = vmul.f32 %v1041, %v1099
    %v1110 = vmul.f32 %v1042, %v1099
    %v1111 = vmul.f32 %v1043, %v1099
    %v1112 = vmul.f32 %v1044, %v1099
    %v1113 = vmul.f32 %v1045, %v1099
    %v1114 = vmul.f32 %v1046, %v1099
    %v1115 = vmul.f32 %v1047, %v1099
    %v1116 = vmul.f32 %v1048, %v1099
    %v1117 = vmul.f32 %v1049, %v1099
    %v1118 = vmul.f32 %v1050, %v1099
    %v1119 = vmul.f32 %v1051, %v1099
    %v1120 = vmul.f32 %v1052, %v1099
    %v1121 = vmul.f32 %v1053, %v1099
    %v1122 = vmul.f32 %v1054, %v1099
    %v1123 = vmul.f32 %v1055, %v1099
    %v1124 = vmul.f32 %v1056, %v1099
    %v1125 = vmul.f32 %v1057, %v1099
    %v1126 = vmul.f32 %v1058, %v1099
    %v1127 = vmul.f32 %v1059, %v1099
    %v1128 = vmul.f32 %v1060, %v1099
    %v1129 = vmul.f32 %v1061, %v1099
    %v1130 = vmul.f32 %v1062, %v1099
    %v1131 = vmul.f32 %v1063, %v1099
    %v1132 = vmul.f32 %v1064, %v1099
    %v1133 = vmul.f32 %v1065, %v1099
    %v1134 = vmul.f32 %v1066, %v1099
    %v1135 = vmul.f32 %v1067, %v1099
    %v1136 = vmul.f32 %v1068, %v1099
    %v1137 = vmul.f32 %v1069, %v1099
    %v1138 = vmul.f32 %v1070, %v1099
    %v1139 = vmul.f32 %v1071, %v1099
    %v1140 = vmul.f32 %v1072, %v1099
    %v1141 = vmul.f32 %v1073, %v1099
    %v1142 = vmul.f32 %v1074, %v1099
    %v1143 = vmul.f32 %v1075, %v1099
    %v1144 = vmul.f32 %v1076, %v1099
    %v1145 = vmul.f32 %v1077, %v1099
    %v1146 = vmul.f32 %v1078, %v1099
    %v1147 = vmul.f32 %v1079, %v1099
    %v1148 = vmul.f32 %v1080, %v1099
    %v1149 = vmul.f32 %v1081, %v1099
    %v1150 = vmul.f32 %v1082, %v1099
    %v1151 = vmul.f32 %v1083, %v1099
    %v1152 = vmul.f32 %v1084, %v1099
    %v1153 = vmul.f32 %v1085, %v1099
    %v1154 = vmul.f32 %v1086, %v1099
    %v1155 = vmul.f32 %v1087, %v1099
    %v1156 = vmul.f32 %v1088, %v1099
    %v1157 = vmul.f32 %v1089, %v1099
    %v1158 = vmul.f32 %v1090, %v1099
    %v1159 = vmul.f32 %v1091, %v1099
    %v1160 = vmul.f32 %v1092, %v1099
    %v1161 = vmul.f32 %v1093, %v1099
    %v1162 = vmul.f32 %v1094, %v1099
    %v1163 = vmul.f32 %v1095, %v1099
    %v1165 = vlaneseq
    %v1166 = vshrl.u32 %v1165, 7
    %v1167 = vsub.s32 0, %v1166
    %v1168 = vrot.slane %v821, %v1167
    %v1170 = vadd.f32 %v1100, %v1168
    %v1171 = vadd.f32 %v1101, %v1168
    %v1172 = vadd.f32 %v1102, %v1168
    %v1173 = vadd.f32 %v1103, %v1168
    %v1174 = vadd.f32 %v1104, %v1168
    %v1175 = vadd.f32 %v1105, %v1168
    %v1176 = vadd.f32 %v1106, %v1168
    %v1177 = vadd.f32 %v1107, %v1168
    %v1178 = vadd.f32 %v1108, %v1168
    %v1179 = vadd.f32 %v1109, %v1168
    %v1180 = vadd.f32 %v1110, %v1168
    %v1181 = vadd.f32 %v1111, %v1168
    %v1182 = vadd.f32 %v1112, %v1168
    %v1183 = vadd.f32 %v1113, %v1168
    %v1184 = vadd.f32 %v1114, %v1168
    %v1185 = vadd.f32 %v1115, %v1168
    %v1186 = vadd.f32 %v1116, %v1168
    %v1187 = vadd.f32 %v1117, %v1168
    %v1188 = vadd.f32 %v1118, %v1168
    %v1189 = vadd.f32 %v1119, %v1168
    %v1190 = vadd.f32 %v1120, %v1168
    %v1191 = vadd.f32 %v1121, %v1168
    %v1192 = vadd.f32 %v1122, %v1168
    %v1193 = vadd.f32 %v1123, %v1168
    %v1194 = vadd.f32 %v1124, %v1168
    %v1195 = vadd.f32 %v1125, %v1168
    %v1196 = vadd.f32 %v1126, %v1168
    %v1197 = vadd.f32 %v1127, %v1168
    %v1198 = vadd.f32 %v1128, %v1168
    %v1199 = vadd.f32 %v1129, %v1168
    %v1200 = vadd.f32 %v1130, %v1168
    %v1201 = vadd.f32 %v1131, %v1168
    %v1202 = vadd.f32 %v1132, %v1168
    %v1203 = vadd.f32 %v1133, %v1168
    %v1204 = vadd.f32 %v1134, %v1168
    %v1205 = vadd.f32 %v1135, %v1168
    %v1206 = vadd.f32 %v1136, %v1168
    %v1207 = vadd.f32 %v1137, %v1168
    %v1208 = vadd.f32 %v1138, %v1168
    %v1209 = vadd.f32 %v1139, %v1168
    %v1210 = vadd.f32 %v1140, %v1168
    %v1211 = vadd.f32 %v1141, %v1168
    %v1212 = vadd.f32 %v1142, %v1168
    %v1213 = vadd.f32 %v1143, %v1168
    %v1214 = vadd.f32 %v1144, %v1168
    %v1215 = vadd.f32 %v1145, %v1168
    %v1216 = vadd.f32 %v1146, %v1168
    %v1217 = vadd.f32 %v1147, %v1168
    %v1218 = vadd.f32 %v1148, %v1168
    %v1219 = vadd.f32 %v1149, %v1168
    %v1220 = vadd.f32 %v1150, %v1168
    %v1221 = vadd.f32 %v1151, %v1168
    %v1222 = vadd.f32 %v1152, %v1168
    %v1223 = vadd.f32 %v1153, %v1168
    %v1224 = vadd.f32 %v1154, %v1168
    %v1225 = vadd.f32 %v1155, %v1168
    %v1226 = vadd.f32 %v1156, %v1168
    %v1227 = vadd.f32 %v1157, %v1168
    %v1228 = vadd.f32 %v1158, %v1168
    %v1229 = vadd.f32 %v1159, %v1168
    %v1230 = vadd.f32 %v1160, %v1168
    %v1231 = vadd.f32 %v1161, %v1168
    %v1232 = vadd.f32 %v1162, %v1168
    %v1233 = vadd.f32 %v1163, %v1168
    %v1234 = vmax.f32 %v1170, 0.0
    %v1235 = vmax.f32 %v1171, 0.0
    %v1236 = vmax.f32 %v1172, 0.0
    %v1237 = vmax.f32 %v1173, 0.0
    %v1238 = vmax.f32 %v1174, 0.0
    %v1239 = vmax.f32 %v1175, 0.0
    %v1240 = vmax.f32 %v1176, 0.0
    %v1241 = vmax.f32 %v1177, 0.0
    %v1242 = vmax.f32 %v1178, 0.0
    %v1243 = vmax.f32 %v1179, 0.0
    %v1244 = vmax.f32 %v1180, 0.0
    %v1245 = vmax.f32 %v1181, 0.0
    %v1246 = vmax.f32 %v1182, 0.0
    %v1247 = vmax.f32 %v1183, 0.0
    %v1248 = vmax.f32 %v1184, 0.0
    %v1249 = vmax.f32 %v1185, 0.0
    %v1250 = vmax.f32 %v1186, 0.0
    %v1251 = vmax.f32 %v1187, 0.0
    %v1252 = vmax.f32 %v1188, 0.0
    %v1253 = vmax.f32 %v1189, 0.0
    %v1254 = vmax.f32 %v1190, 0.0
    %v1255 = vmax.f32 %v1191, 0.0
    %v1256 = vmax.f32 %v1192, 0.0
    %v1257 = vmax.f32 %v1193, 0.0
    %v1258 = vmax.f32 %v1194, 0.0
    %v1259 = vmax.f32 %v1195, 0.0
    %v1260 = vmax.f32 %v1196, 0.0
    %v1261 = vmax.f32 %v1197, 0.0
    %v1262 = vmax.f32 %v1198, 0.0
    %v1263 = vmax.f32 %v1199, 0.0
    %v1264 = vmax.f32 %v1200, 0.0
    %v1265 = vmax.f32 %v1201, 0.0
    %v1266 = vmax.f32 %v1202, 0.0
    %v1267 = vmax.f32 %v1203, 0.0
    %v1268 = vmax.f32 %v1204, 0.0
    %v1269 = vmax.f32 %v1205, 0.0
    %v1270 = vmax.f32 %v1206, 0.0
    %v1271 = vmax.f32 %v1207, 0.0
    %v1272 = vmax.f32 %v1208, 0.0
    %v1273 = vmax.f32 %v1209, 0.0
    %v1274 = vmax.f32 %v1210, 0.0
    %v1275 = vmax.f32 %v1211, 0.0
    %v1276 = vmax.f32 %v1212, 0.0
    %v1277 = vmax.f32 %v1213, 0.0
    %v1278 = vmax.f32 %v1214, 0.0
    %v1279 = vmax.f32 %v1215, 0.0
    %v1280 = vmax.f32 %v1216, 0.0
    %v1281 = vmax.f32 %v1217, 0.0
    %v1282 = vmax.f32 %v1218, 0.0
    %v1283 = vmax.f32 %v1219, 0.0
    %v1284 = vmax.f32 %v1220, 0.0
    %v1285 = vmax.f32 %v1221, 0.0
    %v1286 = vmax.f32 %v1222, 0.0
    %v1287 = vmax.f32 %v1223, 0.0
    %v1288 = vmax.f32 %v1224, 0.0
    %v1289 = vmax.f32 %v1225, 0.0
    %v1290 = vmax.f32 %v1226, 0.0
    %v1291 = vmax.f32 %v1227, 0.0
    %v1292 = vmax.f32 %v1228, 0.0
    %v1293 = vmax.f32 %v1229, 0.0
    %v1294 = vmax.f32 %v1230, 0.0
    %v1295 = vmax.f32 %v1231, 0.0
    %v1296 = vmax.f32 %v1232, 0.0
    %v1297 = vmax.f32 %v1233, 0.0
    %v1298 = vpack.c.bf16 %v1235, %v1234
    %v1299 = vpack.c.bf16 %v1237, %v1236
    %v1300 = vpack.c.bf16 %v1239, %v1238
    %v1301 = vpack.c.bf16 %v1241, %v1240
    %v1302 = vpack.c.bf16 %v1243, %v1242
    %v1303 = vpack.c.bf16 %v1245, %v1244
    %v1304 = vpack.c.bf16 %v1247, %v1246
    %v1305 = vpack.c.bf16 %v1249, %v1248
    %v1306 = vpack.c.bf16 %v1251, %v1250
    %v1307 = vpack.c.bf16 %v1253, %v1252
    %v1308 = vpack.c.bf16 %v1255, %v1254
    %v1309 = vpack.c.bf16 %v1257, %v1256
    %v1310 = vpack.c.bf16 %v1259, %v1258
    %v1311 = vpack.c.bf16 %v1261, %v1260
    %v1312 = vpack.c.bf16 %v1263, %v1262
    %v1313 = vpack.c.bf16 %v1265, %v1264
    %v1314 = vpack.c.bf16 %v1267, %v1266
    %v1315 = vpack.c.bf16 %v1269, %v1268
    %v1316 = vpack.c.bf16 %v1271, %v1270
    %v1317 = vpack.c.bf16 %v1273, %v1272
    %v1318 = vpack.c.bf16 %v1275, %v1274
    %v1319 = vpack.c.bf16 %v1277, %v1276
    %v1320 = vpack.c.bf16 %v1279, %v1278
    %v1321 = vpack.c.bf16 %v1281, %v1280
    %v1322 = vpack.c.bf16 %v1283, %v1282
    %v1323 = vpack.c.bf16 %v1285, %v1284
    %v1324 = vpack.c.bf16 %v1287, %v1286
    %v1325 = vpack.c.bf16 %v1289, %v1288
    %v1326 = vpack.c.bf16 %v1291, %v1290
    %v1327 = vpack.c.bf16 %v1293, %v1292
    %v1328 = vpack.c.bf16 %v1295, %v1294
    %v1329 = vpack.c.bf16 %v1297, %v1296
    %v1362 = vunpack.c.l.b16 %v1298
    %v1363 = vunpack.c.h.b16 %v1298
    %v1364 = vunpack.c.l.b16 %v1299
    %v1365 = vunpack.c.h.b16 %v1299
    %v1366 = vunpack.c.l.b16 %v1300
    %v1367 = vunpack.c.h.b16 %v1300
    %v1368 = vunpack.c.l.b16 %v1301
    %v1369 = vunpack.c.h.b16 %v1301
    %v1370 = vunpack.c.l.b16 %v1302
    %v1371 = vunpack.c.h.b16 %v1302
    %v1372 = vunpack.c.l.b16 %v1303
    %v1373 = vunpack.c.h.b16 %v1303
    %v1374 = vunpack.c.l.b16 %v1304
    %v1375 = vunpack.c.h.b16 %v1304
    %v1376 = vunpack.c.l.b16 %v1305
    %v1377 = vunpack.c.h.b16 %v1305
    %v1378 = vunpack.c.l.b16 %v1306
    %v1379 = vunpack.c.h.b16 %v1306
    %v1380 = vunpack.c.l.b16 %v1307
    %v1381 = vunpack.c.h.b16 %v1307
    %v1382 = vunpack.c.l.b16 %v1308
    %v1383 = vunpack.c.h.b16 %v1308
    %v1384 = vunpack.c.l.b16 %v1309
    %v1385 = vunpack.c.h.b16 %v1309
    %v1386 = vunpack.c.l.b16 %v1310
    %v1387 = vunpack.c.h.b16 %v1310
    %v1388 = vunpack.c.l.b16 %v1311
    %v1389 = vunpack.c.h.b16 %v1311
    %v1390 = vunpack.c.l.b16 %v1312
    %v1391 = vunpack.c.h.b16 %v1312
    %v1392 = vunpack.c.l.b16 %v1313
    %v1393 = vunpack.c.h.b16 %v1313
    %v1394 = vunpack.c.l.b16 %v1314
    %v1395 = vunpack.c.h.b16 %v1314
    %v1396 = vunpack.c.l.b16 %v1315
    %v1397 = vunpack.c.h.b16 %v1315
    %v1398 = vunpack.c.l.b16 %v1316
    %v1399 = vunpack.c.h.b16 %v1316
    %v1400 = vunpack.c.l.b16 %v1317
    %v1401 = vunpack.c.h.b16 %v1317
    %v1402 = vunpack.c.l.b16 %v1318
    %v1403 = vunpack.c.h.b16 %v1318
    %v1404 = vunpack.c.l.b16 %v1319
    %v1405 = vunpack.c.h.b16 %v1319
    %v1406 = vunpack.c.l.b16 %v1320
    %v1407 = vunpack.c.h.b16 %v1320
    %v1408 = vunpack.c.l.b16 %v1321
    %v1409 = vunpack.c.h.b16 %v1321
    %v1410 = vunpack.c.l.b16 %v1322
    %v1411 = vunpack.c.h.b16 %v1322
    %v1412 = vunpack.c.l.b16 %v1323
    %v1413 = vunpack.c.h.b16 %v1323
    %v1414 = vunpack.c.l.b16 %v1324
    %v1415 = vunpack.c.h.b16 %v1324
    %v1416 = vunpack.c.l.b16 %v1325
    %v1417 = vunpack.c.h.b16 %v1325
    %v1418 = vunpack.c.l.b16 %v1326
    %v1419 = vunpack.c.h.b16 %v1326
    %v1420 = vunpack.c.l.b16 %v1327
    %v1421 = vunpack.c.h.b16 %v1327
    %v1422 = vunpack.c.l.b16 %v1328
    %v1423 = vunpack.c.h.b16 %v1328
    %v1424 = vunpack.c.l.b16 %v1329
    %v1425 = vunpack.c.h.b16 %v1329
    %v1426 = vpack.c.b16 %v1362, %v1362
    %v1427 = vpack.c.b16 %v1363, %v1363
    %v1428 = vpack.c.b16 %v1364, %v1364
    %v1429 = vpack.c.b16 %v1365, %v1365
    %v1430 = vpack.c.b16 %v1366, %v1366
    %v1431 = vpack.c.b16 %v1367, %v1367
    %v1432 = vpack.c.b16 %v1368, %v1368
    %v1433 = vpack.c.b16 %v1369, %v1369
    %v1434 = vpack.c.b16 %v1370, %v1370
    %v1435 = vpack.c.b16 %v1371, %v1371
    %v1436 = vpack.c.b16 %v1372, %v1372
    %v1437 = vpack.c.b16 %v1373, %v1373
    %v1438 = vpack.c.b16 %v1374, %v1374
    %v1439 = vpack.c.b16 %v1375, %v1375
    %v1440 = vpack.c.b16 %v1376, %v1376
    %v1441 = vpack.c.b16 %v1377, %v1377
    %v1442 = vpack.c.b16 %v1378, %v1378
    %v1443 = vpack.c.b16 %v1379, %v1379
    %v1444 = vpack.c.b16 %v1380, %v1380
    %v1445 = vpack.c.b16 %v1381, %v1381
    %v1446 = vpack.c.b16 %v1382, %v1382
    %v1447 = vpack.c.b16 %v1383, %v1383
    %v1448 = vpack.c.b16 %v1384, %v1384
    %v1449 = vpack.c.b16 %v1385, %v1385
    %v1450 = vpack.c.b16 %v1386, %v1386
    %v1451 = vpack.c.b16 %v1387, %v1387
    %v1452 = vpack.c.b16 %v1388, %v1388
    %v1453 = vpack.c.b16 %v1389, %v1389
    %v1454 = vpack.c.b16 %v1390, %v1390
    %v1455 = vpack.c.b16 %v1391, %v1391
    %v1456 = vpack.c.b16 %v1392, %v1392
    %v1457 = vpack.c.b16 %v1393, %v1393
    %v1458 = vpack.c.b16 %v1394, %v1394
    %v1459 = vpack.c.b16 %v1395, %v1395
    %v1460 = vpack.c.b16 %v1396, %v1396
    %v1461 = vpack.c.b16 %v1397, %v1397
    %v1462 = vpack.c.b16 %v1398, %v1398
    %v1463 = vpack.c.b16 %v1399, %v1399
    %v1464 = vpack.c.b16 %v1400, %v1400
    %v1465 = vpack.c.b16 %v1401, %v1401
    %v1466 = vpack.c.b16 %v1402, %v1402
    %v1467 = vpack.c.b16 %v1403, %v1403
    %v1468 = vpack.c.b16 %v1404, %v1404
    %v1469 = vpack.c.b16 %v1405, %v1405
    %v1470 = vpack.c.b16 %v1406, %v1406
    %v1471 = vpack.c.b16 %v1407, %v1407
    %v1472 = vpack.c.b16 %v1408, %v1408
    %v1473 = vpack.c.b16 %v1409, %v1409
    %v1474 = vpack.c.b16 %v1410, %v1410
    %v1475 = vpack.c.b16 %v1411, %v1411
    %v1476 = vpack.c.b16 %v1412, %v1412
    %v1477 = vpack.c.b16 %v1413, %v1413
    %v1478 = vpack.c.b16 %v1414, %v1414
    %v1479 = vpack.c.b16 %v1415, %v1415
    %v1480 = vpack.c.b16 %v1416, %v1416
    %v1481 = vpack.c.b16 %v1417, %v1417
    %v1482 = vpack.c.b16 %v1418, %v1418
    %v1483 = vpack.c.b16 %v1419, %v1419
    %v1484 = vpack.c.b16 %v1420, %v1420
    %v1485 = vpack.c.b16 %v1421, %v1421
    %v1486 = vpack.c.b16 %v1422, %v1422
    %v1487 = vpack.c.b16 %v1423, %v1423
    %v1488 = vpack.c.b16 %v1424, %v1424
    %v1489 = vpack.c.b16 %v1425, %v1425
    %1554 = vst [vmem:[#allocation2] sm:$0xf] %v1426
    %1555 = vst [vmem:[#allocation2 + $0x4] sm:$0xf] %v1427
    %1556 = vst [vmem:[#allocation2 + $0x8] sm:$0xf] %v1428
    %1557 = vst [vmem:[#allocation2 + $0xc] sm:$0xf] %v1429
    %1558 = vst [vmem:[#allocation2 + $0x10] sm:$0xf] %v1430
    %1559 = vst [vmem:[#allocation2 + $0x14] sm:$0xf] %v1431
    %1560 = vst [vmem:[#allocation2 + $0x18] sm:$0xf] %v1432
    %1561 = vst [vmem:[#allocation2 + $0x1c] sm:$0xf] %v1433
    %1562 = vst [vmem:[#allocation2 + $0x20] sm:$0xf] %v1434
    %1563 = vst [vmem:[#allocation2 + $0x24] sm:$0xf] %v1435
    %1564 = vst [vmem:[#allocation2 + $0x28] sm:$0xf] %v1436
    %1565 = vst [vmem:[#allocation2 + $0x2c] sm:$0xf] %v1437
    %1566 = vst [vmem:[#allocation2 + $0x30] sm:$0xf] %v1438
    %1567 = vst [vmem:[#allocation2 + $0x34] sm:$0xf] %v1439
    %1568 = vst [vmem:[#allocation2 + $0x38] sm:$0xf] %v1440
    %1569 = vst [vmem:[#allocation2 + $0x3c] sm:$0xf] %v1441
    %1570 = vst [vmem:[#allocation2 + $0x40] sm:$0xf] %v1442
    %1571 = vst [vmem:[#allocation2 + $0x44] sm:$0xf] %v1443
    %1572 = vst [vmem:[#allocation2 + $0x48] sm:$0xf] %v1444
    %1573 = vst [vmem:[#allocation2 + $0x4c] sm:$0xf] %v1445
    %1574 = vst [vmem:[#allocation2 + $0x50] sm:$0xf] %v1446
    %1575 = vst [vmem:[#allocation2 + $0x54] sm:$0xf] %v1447
    %1576 = vst [vmem:[#allocation2 + $0x58] sm:$0xf] %v1448
    %1577 = vst [vmem:[#allocation2 + $0x5c] sm:$0xf] %v1449
    %1578 = vst [vmem:[#allocation2 + $0x60] sm:$0xf] %v1450
    %1579 = vst [vmem:[#allocation2 + $0x64] sm:$0xf] %v1451
    %1580 = vst [vmem:[#allocation2 + $0x68] sm:$0xf] %v1452
    %1581 = vst [vmem:[#allocation2 + $0x6c] sm:$0xf] %v1453
    %1582 = vst [vmem:[#allocation2 + $0x70] sm:$0xf] %v1454
    %1583 = vst [vmem:[#allocation2 + $0x74] sm:$0xf] %v1455
    %1584 = vst [vmem:[#allocation2 + $0x78] sm:$0xf] %v1456
    %1585 = vst [vmem:[#allocation2 + $0x7c] sm:$0xf] %v1457
    %1586 = vst [vmem:[#allocation2 + $0x80] sm:$0xf] %v1458
    %1587 = vst [vmem:[#allocation2 + $0x84] sm:$0xf] %v1459
    %1588 = vst [vmem:[#allocation2 + $0x88] sm:$0xf] %v1460
    %1589 = vst [vmem:[#allocation2 + $0x8c] sm:$0xf] %v1461
    %1590 = vst [vmem:[#allocation2 + $0x90] sm:$0xf] %v1462
    %1591 = vst [vmem:[#allocation2 + $0x94] sm:$0xf] %v1463
    %1592 = vst [vmem:[#allocation2 + $0x98] sm:$0xf] %v1464
    %1593 = vst [vmem:[#allocation2 + $0x9c] sm:$0xf] %v1465
    %1594 = vst [vmem:[#allocation2 + $0xa0] sm:$0xf] %v1466
    %1595 = vst [vmem:[#allocation2 + $0xa4] sm:$0xf] %v1467
    %1596 = vst [vmem:[#allocation2 + $0xa8] sm:$0xf] %v1468
    %1597 = vst [vmem:[#allocation2 + $0xac] sm:$0xf] %v1469
    %1598 = vst [vmem:[#allocation2 + $0xb0] sm:$0xf] %v1470
    %1599 = vst [vmem:[#allocation2 + $0xb4] sm:$0xf] %v1471
    %1600 = vst [vmem:[#allocation2 + $0xb8] sm:$0xf] %v1472
    %1601 = vst [vmem:[#allocation2 + $0xbc] sm:$0xf] %v1473
    %1602 = vst [vmem:[#allocation2 + $0xc0] sm:$0xf] %v1474
    %1603 = vst [vmem:[#allocation2 + $0xc4] sm:$0xf] %v1475
    %1604 = vst [vmem:[#allocation2 + $0xc8] sm:$0xf] %v1476
    %1605 = vst [vmem:[#allocation2 + $0xcc] sm:$0xf] %v1477
    %1606 = vst [vmem:[#allocation2 + $0xd0] sm:$0xf] %v1478
    %1607 = vst [vmem:[#allocation2 + $0xd4] sm:$0xf] %v1479
    %1608 = vst [vmem:[#allocation2 + $0xd8] sm:$0xf] %v1480
    %1609 = vst [vmem:[#allocation2 + $0xdc] sm:$0xf] %v1481
    %1610 = vst [vmem:[#allocation2 + $0xe0] sm:$0xf] %v1482
    %1611 = vst [vmem:[#allocation2 + $0xe4] sm:$0xf] %v1483
    %1612 = vst [vmem:[#allocation2 + $0xe8] sm:$0xf] %v1484
    %1613 = vst [vmem:[#allocation2 + $0xec] sm:$0xf] %v1485
    %1614 = vst [vmem:[#allocation2 + $0xf0] sm:$0xf] %v1486
    %1615 = vst [vmem:[#allocation2 + $0xf4] sm:$0xf] %v1487
    %1616 = vst [vmem:[#allocation2 + $0xf8] sm:$0xf] %v1488
    %1617 = vst [vmem:[#allocation2 + $0xfc] sm:$0xf] %v1489
    // Predicated region
    $region18: #{conv_bn.1} parent=1 // pred_check
      _
    $region19: #{conv_bn.1} parent=1 // pred_check_branch
      %1619 = sbr.rel (0) target = $region21
    $region20: #{conv_bn.1} parent=1 // pred_region
      %s1621 = ssub.s32 4096, 4096
      %1622 = vsyncadd [#allocation3], %s1621
      %s1623 = sshll.u32 [#allocation2], 4
      %s1624 = int_to_ptr.vmem [resolvable:$true] %s1623
      %1629 = dma.vmem_to_hbm [thread:$0]  %s1624, 4096, %s4, [#allocation3], 64, 64, 4
    $region21: #{conv_bn.1} parent=1 // pred_fallthru
      _
    // Predicated region
    $region22: #{conv_bn.1} parent=1 // pred_check
      _
    $region23: #{conv_bn.1} parent=1 // pred_check_branch
      %1631 = sbr.rel (0) target = $region25
    $region24: #{conv_bn.1} parent=1 // pred_region
      %1632 = dma.done [#allocation3], 4096
    $region25: #{conv_bn.1} parent=1 // pred_fallthru
      _
    %1633 = vsyncpa [#allocation3], 1

</llo_original>
